<compile_context>
chip_gen: v7x
topology: tpu7x:2x2x1
jax: 0.10.0
libtpu: 0.0.40
codegen_flags: <defaults>
</compile_context>

<pallas_src>
import functools

import jax
import jax.numpy as jnp
from jax.experimental import pallas as pl
from jax.experimental.pallas import tpu as pltpu

BN_EPS = 1e-5


def _round_up(x, m):
    return (x + m - 1) // m * m


def _ceil_div(a, b):
    return -(-a // b)


@functools.lru_cache(maxsize=1)
def _vmem_budget():
    """3/4 of physical VMEM (~96 MiB on v5e/v6e, 48 MiB on v7x); safe fallback."""
    try:
        cap = int(pltpu.get_tpu_info().vmem_capacity_bytes)
    except Exception:
        cap = 64 * 1024 * 1024
    return max(32 * 1024 * 1024, min(cap * 3 // 4, 112 * 1024 * 1024))


def _cp_for(c):
    """Lane padding for a channel count: 128, or 256-multiples above 128."""
    return 128 if c <= 128 else _round_up(c, 256)


def _choose_tm(m, cap):
    """Row-tile size: as large as the cap allows, but >=2 tiles when m > 256 so
    a two-TensorCore chip (v7x) can shard the parallel M axis."""
    if m <= 256:
        return _round_up(m, 16)
    tiles = max(2, _ceil_div(m, cap))
    return min(cap, _round_up(_ceil_div(m, tiles), 16))


# ----------------------------- Pallas kernels ------------------------------ #

def _matmul_stats_kernel(p_ref, w_ref, y_ref, s_ref, q_ref, acc_ref):
    """One (TM, TN) tile of patches @ weights (K-tiled): bf16 y + f32 col stats.

    p: (TM, TK) bf16   w: (TK, TN) bf16   y: (TM, TN) bf16
    s, q: (8, TN) f32  per-M-tile column sum / sum-of-squares (sublane-broadcast)
    acc: (TM, TN) f32 VMEM scratch accumulator (kept so the HBM output is bf16).
    """
    k = pl.program_id(2)

    @pl.when(k == 0)
    def _():
        acc_ref[...] = jnp.zeros_like(acc_ref)

    acc_ref[...] += jnp.dot(p_ref[...], w_ref[...],
                            preferred_element_type=jnp.float32)

    @pl.when(k == pl.num_programs(2) - 1)
    def _():
        acc = acc_ref[...]
        y_ref[...] = acc.astype(y_ref.dtype)
        s_ref[...] = jnp.broadcast_to(
            jnp.sum(acc, axis=0, keepdims=True), s_ref.shape)
        q_ref[...] = jnp.broadcast_to(
            jnp.sum(acc * acc, axis=0, keepdims=True), q_ref.shape)


def _colstats_kernel(x_ref, s_ref, q_ref):
    """Per-M-tile column sum / sum-of-squares of a (TM, TN) bf16 tile (f32 math)."""
    x = x_ref[...].astype(jnp.float32)
    s_ref[...] = jnp.broadcast_to(jnp.sum(x, axis=0, keepdims=True), s_ref.shape)
    q_ref[...] = jnp.broadcast_to(jnp.sum(x * x, axis=0, keepdims=True), q_ref.shape)


def _bn_relu_apply_kernel(x_ref, s_ref, q_ref, g_ref, b_ref, o_ref, *, denom):
    """Fused BN finalize + relu(x*scale+shift) over one (TM, TN) tile.

    s/q hold per-M-tile column sums broadcast across 8 sublanes, so summing all
    rows over-counts by 8x; `denom` = 1 / (8 * true_M).  Variance uses
    E[x^2] - E[x]^2 in f32 (clamped at 0); padded rows/columns are exactly zero
    so they do not perturb the statistics.
    """
    mean = jnp.sum(s_ref[...], axis=0, keepdims=True) * denom
    ex2 = jnp.sum(q_ref[...], axis=0, keepdims=True) * denom
    var = jnp.maximum(ex2 - mean * mean, 0.0)
    scale = g_ref[...] * jax.lax.rsqrt(var + BN_EPS)
    shift = b_ref[...] - mean * scale
    y = x_ref[...].astype(jnp.float32) * scale + shift
    o_ref[...] = jnp.maximum(y, 0.0).astype(o_ref.dtype)


# ------------------------------ Pallas wrappers ----------------------------- #

def _bn_relu_apply(x, s, q, gamma, beta, m_true, tm, tn):
    """x: (Mp, Cp) bf16, s/q: (mt*8, Cp) f32, gamma/beta: (1, Cp) f32 -> bf16."""
    mp, cp = x.shape
    mt, nt = mp // tm, cp // tn
    kernel = functools.partial(_bn_relu_apply_kernel, denom=1.0 / (8.0 * m_true))
    return pl.pallas_call(
        kernel,
        out_shape=jax.ShapeDtypeStruct((mp, cp), jnp.bfloat16),
        grid=(mt, nt),
        in_specs=[pl.BlockSpec((tm, tn), lambda mi, ni: (mi, ni)),
                  pl.BlockSpec((mt * 8, tn), lambda mi, ni: (0, ni)),
                  pl.BlockSpec((mt * 8, tn), lambda mi, ni: (0, ni)),
                  pl.BlockSpec((1, tn), lambda mi, ni: (0, ni)),
                  pl.BlockSpec((1, tn), lambda mi, ni: (0, ni))],
        out_specs=pl.BlockSpec((tm, tn), lambda mi, ni: (mi, ni)),
        compiler_params=pltpu.CompilerParams(
            dimension_semantics=("parallel", "parallel"),
            vmem_limit_bytes=_vmem_budget()),
        cost_estimate=pl.CostEstimate(flops=6 * mp * cp, transcendentals=cp,
                                      bytes_accessed=4 * mp * cp),
    )(x, s, q, gamma, beta)


def _extract_patches(x, k, stride, pad):
    """x: (N, H, W, C) -> bf16 patches (N*Ho*Wo, k*k*C) + output spatial dims."""
    N, H, W, C = x.shape
    x = x.astype(jnp.bfloat16)
    if pad:
        x = jnp.pad(x, ((0, 0), (pad, pad), (pad, pad), (0, 0)))
    Ho = (H + 2 * pad - k) // stride + 1
    Wo = (W + 2 * pad - k) // stride + 1
    if k == 1 and stride == 1:
        patches = x
    else:
        cols = []
        for di in range(k):
            for dj in range(k):
                cols.append(x[:, di:di + stride * Ho:stride,
                              dj:dj + stride * Wo:stride, :])
        patches = jnp.concatenate(cols, axis=-1)        # (N, Ho, Wo, k*k*C)
    return patches.reshape(N * Ho * Wo, k * k * C), (N, Ho, Wo)


def conv_bn_relu(x, params, *, stride, pad):
    """Fused Conv2d + BatchNorm(batch stats) + ReLU.  (N,H,W,Cin) bf16 -> bf16."""
    w = params["w"]                                      # (k, k, Cin, Cout) f32
    k, _, cin, cout = w.shape
    patches, (n, ho, wo) = _extract_patches(x, k, stride, pad)
    m, kdim = patches.shape

    budget = _vmem_budget()
    tm_cap = 1024 if budget >= (80 << 20) else 512       # big tiles on v5e/v6e
    tm = _choose_tm(m, tm_cap)
    tk = min(512, _round_up(kdim, 128))
    mp, kp = _round_up(m, tm), _round_up(kdim, tk)
    cp = params["gamma"].shape[1]                        # pre-padded at init
    tn = min(256, cp)
    mt, nt, kt = mp // tm, cp // tn, kp // tk

    p_bf = patches
    if mp != m or kp != kdim:
        p_bf = jnp.pad(patches, ((0, mp - m), (0, kp - kdim)))
    w_bf = jnp.pad(w.reshape(kdim, cout),
                   ((0, kp - kdim), (0, cp - cout))).astype(jnp.bfloat16)

    flops = 2 * mp * kp * cp
    bytes_accessed = 2 * mp * kp + 2 * kp * cp + 2 * mp * cp + 64 * mt * cp

    y, s, q = pl.pallas_call(
        _matmul_stats_kernel,
        out_shape=(jax.ShapeDtypeStruct((mp, cp), jnp.bfloat16),
                   jax.ShapeDtypeStruct((mt * 8, cp), jnp.float32),
                   jax.ShapeDtypeStruct((mt * 8, cp), jnp.float32)),
        grid=(mt, nt, kt),
        in_specs=[pl.BlockSpec((tm, tk), lambda mi, ni, ki: (mi, ki)),
                  pl.BlockSpec((tk, tn), lambda mi, ni, ki: (ki, ni))],
        out_specs=(pl.BlockSpec((tm, tn), lambda mi, ni, ki: (mi, ni)),
                   pl.BlockSpec((8, tn), lambda mi, ni, ki: (mi, ni)),
                   pl.BlockSpec((8, tn), lambda mi, ni, ki: (mi, ni))),
        scratch_shapes=[pltpu.VMEM((tm, tn), jnp.float32)],
        compiler_params=pltpu.CompilerParams(
            dimension_semantics=("parallel", "parallel", "arbitrary"),
            vmem_limit_bytes=budget),
        cost_estimate=pl.CostEstimate(flops=flops, transcendentals=0,
                                      bytes_accessed=bytes_accessed),
    )(p_bf, w_bf)

    out = _bn_relu_apply(y, s, q, params["gamma"], params["beta"], m, tm, tn)
    return out[:m, :cout].reshape(n, ho, wo, cout)


def bn_relu(x, params):
    """post_activ: BatchNorm (batch stats) + ReLU over (N,H,W,C) bf16 -> bf16."""
    n, h, w, c = x.shape
    m = n * h * w
    budget = _vmem_budget()
    tm_cap = 1024 if budget >= (80 << 20) else 512
    tm = _choose_tm(m, tm_cap)
    mp = _round_up(m, tm)
    cp = params["gamma"].shape[1]
    tn = min(256, cp)
    mt, nt = mp // tm, cp // tn

    xp = jnp.pad(x.reshape(m, c).astype(jnp.bfloat16), ((0, mp - m), (0, cp - c)))

    s, q = pl.pallas_call(
        _colstats_kernel,
        out_shape=(jax.ShapeDtypeStruct((mt * 8, cp), jnp.float32),
                   jax.ShapeDtypeStruct((mt * 8, cp), jnp.float32)),
        grid=(mt, nt),
        in_specs=[pl.BlockSpec((tm, tn), lambda mi, ni: (mi, ni))],
        out_specs=(pl.BlockSpec((8, tn), lambda mi, ni: (mi, ni)),
                   pl.BlockSpec((8, tn), lambda mi, ni: (mi, ni))),
        compiler_params=pltpu.CompilerParams(
            dimension_semantics=("parallel", "parallel"),
            vmem_limit_bytes=budget),
        cost_estimate=pl.CostEstimate(flops=3 * mp * cp, transcendentals=0,
                                      bytes_accessed=2 * mp * cp + 64 * mt * cp),
    )(xp)

    out = _bn_relu_apply(xp, s, q, params["gamma"], params["beta"], m, tm, tn)
    return out[:m, :c].reshape(n, h, w, c)


# ----------------------------- parameter init ------------------------------- #

def _init_conv_bn(key, cin, cout, k):
    kw, kg, kb = jax.random.split(key, 3)
    fan_in = k * k * cin
    w = jax.random.normal(kw, (k, k, cin, cout), jnp.float32) * jnp.sqrt(2.0 / fan_in)
    cp = _cp_for(cout)
    gamma = jnp.zeros((1, cp), jnp.float32).at[:, :cout].set(
        1.0 + 0.1 * jax.random.normal(kg, (1, cout), jnp.float32))
    beta = jnp.zeros((1, cp), jnp.float32).at[:, :cout].set(
        0.1 * jax.random.normal(kb, (1, cout), jnp.float32))
    return {"w": w, "gamma": gamma, "beta": beta}


def init_densenet3(key, stem_channels=64, mid_channels=192, growth_rate=48,
                   num_units=(6, 8, 8, 8)):
    n_keys = 3 + len(num_units) + 2 * sum(num_units) + 2
    keys = iter(jax.random.split(key, n_keys))
    params = {}
    # StemBlock: 3x3/s2 (3->C), 3x3/s1 (C->C), 3x3/s1 (C->2C)
    params["stem"] = [
        _init_conv_bn(next(keys), 3, stem_channels, 3),
        _init_conv_bn(next(keys), stem_channels, stem_channels, 3),
        _init_conv_bn(next(keys), stem_channels, stem_channels * 2, 3),
    ]
    in_ch = stem_channels * 2
    stages = []
    for i, num in enumerate(num_units):
        stage = {"trans": None, "units": []}
        if i != len(num_units) - 1:                      # Transition (1x1, no pool)
            stage["trans"] = _init_conv_bn(next(keys), in_ch, in_ch, 1)
        for _ in range(num):                             # DenseUnit: 1x1 then 3x3
            unit = [_init_conv_bn(next(keys), in_ch, mid_channels, 1),
                    _init_conv_bn(next(keys), mid_channels, growth_rate, 3)]
            stage["units"].append(unit)
            in_ch += growth_rate
        stages.append(stage)
    params["stages"] = stages
    kg, kb = jax.random.split(next(keys))
    cp = _cp_for(in_ch)
    params["post"] = {
        "gamma": jnp.zeros((1, cp), jnp.float32).at[:, :in_ch].set(
            1.0 + 0.1 * jax.random.normal(kg, (1, in_ch), jnp.float32)),
        "beta": jnp.zeros((1, cp), jnp.float32).at[:, :in_ch].set(
            0.1 * jax.random.normal(kb, (1, in_ch), jnp.float32)),
    }
    return params


# --------------------------------- forward ---------------------------------- #

def densenet3_forward(params, x_nchw):
    x = jnp.transpose(x_nchw, (0, 2, 3, 1)).astype(jnp.bfloat16)   # NCHW -> NHWC bf16
    s = params["stem"]
    x = conv_bn_relu(x, s[0], stride=2, pad=1)
    x = conv_bn_relu(x, s[1], stride=1, pad=1)
    x = conv_bn_relu(x, s[2], stride=1, pad=1)
    for stage in params["stages"]:
        if stage["trans"] is not None:
            x = conv_bn_relu(x, stage["trans"], stride=1, pad=0)
        for unit in stage["units"]:
            y = conv_bn_relu(x, unit[0], stride=1, pad=0)    # 1x1 bottleneck
            y = conv_bn_relu(y, unit[1], stride=1, pad=1)    # 3x3 growth
            x = jnp.concatenate([x, y], axis=-1)             # DenseUnit concat (bf16)
    x = bn_relu(x, params["post"])                           # post_activ: BN + ReLU
    return jnp.transpose(x, (0, 3, 1, 2)).astype(jnp.float32)   # NHWC -> NCHW f32


# ----------------------------------- main ------------------------------------ #

if __name__ == "__main__":
    key = jax.random.PRNGKey(0)
    kx, kp = jax.random.split(key)

    # Small but structurally faithful hyper-parameters.
    stem_channels, mid_channels, growth_rate = 8, 16, 8
    num_units = (2, 2, 2, 2)
    params = init_densenet3(kp, stem_channels=stem_channels,
                            mid_channels=mid_channels,
                            growth_rate=growth_rate,
                            num_units=num_units)

    x = jax.random.normal(kx, (2, 3, 16, 16), jnp.float32)   # NCHW, like PyTorch

    fwd = jax.jit(densenet3_forward)
    out = jax.block_until_ready(fwd(params, x))

    expected_c = stem_channels * 2 + growth_rate * sum(num_units)   # 80
    assert out.shape == (2, expected_c, 8, 8), out.shape
    assert jnp.all(jnp.isfinite(out)), "non-finite output"
    print("KERNEL_OK")
</pallas_src>

<mosaic_0001>
module attributes {stable_mosaic.version = 11 : i64} {
  func.func @_matmul_stats_kernel(%arg0: i32, %arg1: i32, %arg2: i32, %arg3: memref<128x128xbf16, #tpu.memory_space<vmem>>, %arg4: memref<128x128xbf16, #tpu.memory_space<vmem>>, %arg5: memref<128x128xbf16, #tpu.memory_space<vmem>>, %arg6: memref<8x128xf32, #tpu.memory_space<vmem>>, %arg7: memref<8x128xf32, #tpu.memory_space<vmem>>, %arg8: memref<128x128xf32, #tpu.memory_space<vmem>>) attributes {dimension_semantics = [#tpu.dimension_semantics<parallel>, #tpu.dimension_semantics<parallel>, #tpu.dimension_semantics<arbitrary>], iteration_bounds = array<i64: 1, 1, 1>, scalar_prefetch = 0 : i64, scratch_operands = 1 : i64, tpu.core_type = #tpu.core_type<tc>, window_params = [{transform_indices = @transform_0, window_bounds = array<i64: 128, 128>}, {transform_indices = @transform_1, window_bounds = array<i64: 128, 128>}, {transform_indices = @transform_2, window_bounds = array<i64: 128, 128>}, {transform_indices = @transform_3, window_bounds = array<i64: 8, 128>}, {transform_indices = @transform_4, window_bounds = array<i64: 8, 128>}]} {
    %c0_i32 = arith.constant 0 : i32
    %0 = arith.cmpi eq, %arg2, %c0_i32 : i32
    %1 = arith.extui %0 : i1 to i32
    %c0_i32_0 = arith.constant 0 : i32
    %2 = arith.cmpi ne, %1, %c0_i32_0 : i32
    scf.if %2 {
      %cst_10 = arith.constant 0.000000e+00 : f32
      %12 = vector.broadcast %cst_10 : f32 to vector<128x128xf32>
      %c0_11 = arith.constant 0 : index
      %c0_12 = arith.constant 0 : index
      %13 = vector.load %arg8[%c0_11, %c0_12] : memref<128x128xf32, #tpu.memory_space<vmem>>, vector<128x128xf32>
      tpu.vector_store %arg8[%c0_11, %c0_12], %12 {strides = array<i32>} : memref<128x128xf32, #tpu.memory_space<vmem>>, vector<128x128xf32>,
    } else {
    }
    %c0 = arith.constant 0 : index
    %c0_1 = arith.constant 0 : index
    %3 = vector.load %arg8[%c0, %c0_1] : memref<128x128xf32, #tpu.memory_space<vmem>>, vector<128x128xf32>
    %c0_2 = arith.constant 0 : index
    %c0_3 = arith.constant 0 : index
    %4 = vector.load %arg3[%c0_2, %c0_3] : memref<128x128xbf16, #tpu.memory_space<vmem>>, vector<128x128xbf16>
    %c0_4 = arith.constant 0 : index
    %c0_5 = arith.constant 0 : index
    %5 = vector.load %arg4[%c0_4, %c0_5] : memref<128x128xbf16, #tpu.memory_space<vmem>>, vector<128x128xbf16>
    %cst = arith.constant dense<0.000000e+00> : vector<128x128xf32>
    %6 = tpu.matmul %4, %5, %cst {dimension_numbers = #tpu.dot_dimension_numbers<[1], [0], [0], [1], [0, 0, 1, 1], [], []>} : vector<128x128xbf16>, vector<128x128xbf16>, vector<128x128xf32> -> vector<128x128xf32>
    %7 = arith.addf %3, %6 : vector<128x128xf32>
    %c0_6 = arith.constant 0 : index
    %c0_7 = arith.constant 0 : index
    %8 = vector.load %arg8[%c0_6, %c0_7] : memref<128x128xf32, #tpu.memory_space<vmem>>, vector<128x128xf32>
    tpu.vector_store %arg8[%c0_6, %c0_7], %7 {strides = array<i32>} : memref<128x128xf32, #tpu.memory_space<vmem>>, vector<128x128xf32>,
    %c0_i32_8 = arith.constant 0 : i32
    %9 = arith.cmpi eq, %arg2, %c0_i32_8 : i32
    %10 = arith.extui %9 : i1 to i32
    %c0_i32_9 = arith.constant 0 : i32
    %11 = arith.cmpi ne, %10, %c0_i32_9 : i32
    scf.if %11 {
      %c0_10 = arith.constant 0 : index
      %c0_11 = arith.constant 0 : index
      %12 = vector.load %arg8[%c0_10, %c0_11] : memref<128x128xf32, #tpu.memory_space<vmem>>, vector<128x128xf32>
      %13 = arith.truncf %12 : vector<128x128xf32> to vector<128x128xbf16>
      %c0_12 = arith.constant 0 : index
      %c0_13 = arith.constant 0 : index
      %14 = vector.load %arg5[%c0_12, %c0_13] : memref<128x128xbf16, #tpu.memory_space<vmem>>, vector<128x128xbf16>
      tpu.vector_store %arg5[%c0_12, %c0_13], %13 {strides = array<i32>} : memref<128x128xbf16, #tpu.memory_space<vmem>>, vector<128x128xbf16>,
      %cst_14 = arith.constant dense<0.000000e+00> : vector<128xf32>
      %15 = vector.multi_reduction <add>, %12, %cst_14 [0] : vector<128x128xf32> to vector<128xf32>
      %16 = vector.shape_cast %15 : vector<128xf32> to vector<1x128xf32>
      %17 = vector.shape_cast %16 : vector<1x128xf32> to vector<1x128xf32>
      %18 = vector.broadcast %17 : vector<1x128xf32> to vector<8x128xf32>
      %c0_15 = arith.constant 0 : index
      %c0_16 = arith.constant 0 : index
      %19 = vector.load %arg6[%c0_15, %c0_16] : memref<8x128xf32, #tpu.memory_space<vmem>>, vector<8x128xf32>
      tpu.vector_store %arg6[%c0_15, %c0_16], %18 {strides = array<i32>} : memref<8x128xf32, #tpu.memory_space<vmem>>, vector<8x128xf32>,
      %20 = arith.mulf %12, %12 : vector<128x128xf32>
      %cst_17 = arith.constant dense<0.000000e+00> : vector<128xf32>
      %21 = vector.multi_reduction <add>, %20, %cst_17 [0] : vector<128x128xf32> to vector<128xf32>
      %22 = vector.shape_cast %21 : vector<128xf32> to vector<1x128xf32>
      %23 = vector.shape_cast %22 : vector<1x128xf32> to vector<1x128xf32>
      %24 = vector.broadcast %23 : vector<1x128xf32> to vector<8x128xf32>
      %c0_18 = arith.constant 0 : index
      %c0_19 = arith.constant 0 : index
      %25 = vector.load %arg7[%c0_18, %c0_19] : memref<8x128xf32, #tpu.memory_space<vmem>>, vector<8x128xf32>
      tpu.vector_store %arg7[%c0_18, %c0_19], %24 {strides = array<i32>} : memref<8x128xf32, #tpu.memory_space<vmem>>, vector<8x128xf32>,
    } else {
    }
    return
  }
  func.func @transform_0(%arg0: i32, %arg1: i32, %arg2: i32) -> (i32, i32) {
    %c0_i32 = arith.constant 0 : i32
    return %arg0, %arg2 : i32, i32
  }
  func.func @transform_1(%arg0: i32, %arg1: i32, %arg2: i32) -> (i32, i32) {
    %c0_i32 = arith.constant 0 : i32
    return %arg2, %arg1 : i32, i32
  }
  func.func @transform_2(%arg0: i32, %arg1: i32, %arg2: i32) -> (i32, i32) {
    %c0_i32 = arith.constant 0 : i32
    return %arg0, %arg1 : i32, i32
  }
  func.func @transform_3(%arg0: i32, %arg1: i32, %arg2: i32) -> (i32, i32) {
    %c0_i32 = arith.constant 0 : i32
    return %arg0, %arg1 : i32, i32
  }
  func.func @transform_4(%arg0: i32, %arg1: i32, %arg2: i32) -> (i32, i32) {
    %c0_i32 = arith.constant 0 : i32
    return %arg0, %arg1 : i32, i32
  }
}

module attributes {stable_mosaic.version = 11 : i64} {
  func.func @_bn_relu_apply_kernel(%arg0: i32, %arg1: i32, %arg2: memref<128x128xbf16, #tpu.memory_space<vmem>>, %arg3: memref<8x128xf32, #tpu.memory_space<vmem>>, %arg4: memref<8x128xf32, #tpu.memory_space<vmem>>, %arg5: memref<1x128xf32, #tpu.memory_space<vmem>>, %arg6: memref<1x128xf32, #tpu.memory_space<vmem>>, %arg7: memref<128x128xbf16, #tpu.memory_space<vmem>>) attributes {dimension_semantics = [#tpu.dimension_semantics<parallel>, #tpu.dimension_semantics<parallel>], iteration_bounds = array<i64: 1, 1>, scalar_prefetch = 0 : i64, scratch_operands = 0 : i64, tpu.core_type = #tpu.core_type<tc>, window_params = [{transform_indices = @transform_0, window_bounds = array<i64: 128, 128>}, {transform_indices = @transform_1, window_bounds = array<i64: 8, 128>}, {transform_indices = @transform_2, window_bounds = array<i64: 8, 128>}, {transform_indices = @transform_3, window_bounds = array<i64: 1, 128>}, {transform_indices = @transform_4, window_bounds = array<i64: 1, 128>}, {transform_indices = @transform_5, window_bounds = array<i64: 128, 128>}]} {
    %c0 = arith.constant 0 : index
    %c0_0 = arith.constant 0 : index
    %0 = vector.load %arg3[%c0, %c0_0] : memref<8x128xf32, #tpu.memory_space<vmem>>, vector<8x128xf32>
    %cst = arith.constant dense<0.000000e+00> : vector<128xf32>
    %1 = vector.multi_reduction <add>, %0, %cst [0] : vector<8x128xf32> to vector<128xf32>
    %2 = vector.shape_cast %1 : vector<128xf32> to vector<1x128xf32>
    %cst_1 = arith.constant 9.765625E-4 : f32
    %3 = vector.broadcast %cst_1 : f32 to vector<1x128xf32>
    %4 = arith.mulf %2, %3 : vector<1x128xf32>
    %c0_2 = arith.constant 0 : index
    %c0_3 = arith.constant 0 : index
    %5 = vector.load %arg4[%c0_2, %c0_3] : memref<8x128xf32, #tpu.memory_space<vmem>>, vector<8x128xf32>
    %cst_4 = arith.constant dense<0.000000e+00> : vector<128xf32>
    %6 = vector.multi_reduction <add>, %5, %cst_4 [0] : vector<8x128xf32> to vector<128xf32>
    %7 = vector.shape_cast %6 : vector<128xf32> to vector<1x128xf32>
    %cst_5 = arith.constant 9.765625E-4 : f32
    %8 = vector.broadcast %cst_5 : f32 to vector<1x128xf32>
    %9 = arith.mulf %7, %8 : vector<1x128xf32>
    %10 = arith.mulf %4, %4 : vector<1x128xf32>
    %11 = arith.subf %9, %10 : vector<1x128xf32>
    %cst_6 = arith.constant 0.000000e+00 : f32
    %12 = vector.broadcast %cst_6 : f32 to vector<1x128xf32>
    %13 = arith.maximumf %11, %12 : vector<1x128xf32>
    %c0_7 = arith.constant 0 : index
    %c0_8 = arith.constant 0 : index
    %14 = vector.load %arg5[%c0_7, %c0_8] : memref<1x128xf32, #tpu.memory_space<vmem>>, vector<1x128xf32>
    %cst_9 = arith.constant 9.99999974E-6 : f32
    %15 = vector.broadcast %cst_9 : f32 to vector<1x128xf32>
    %16 = arith.addf %13, %15 : vector<1x128xf32>
    %17 = math.rsqrt %16 : vector<1x128xf32>
    %18 = arith.mulf %14, %17 : vector<1x128xf32>
    %c0_10 = arith.constant 0 : index
    %c0_11 = arith.constant 0 : index
    %19 = vector.load %arg6[%c0_10, %c0_11] : memref<1x128xf32, #tpu.memory_space<vmem>>, vector<1x128xf32>
    %20 = arith.mulf %4, %18 : vector<1x128xf32>
    %21 = arith.subf %19, %20 : vector<1x128xf32>
    %c0_12 = arith.constant 0 : index
    %c0_13 = arith.constant 0 : index
    %22 = vector.load %arg2[%c0_12, %c0_13] : memref<128x128xbf16, #tpu.memory_space<vmem>>, vector<128x128xbf16>
    %23 = arith.extf %22 : vector<128x128xbf16> to vector<128x128xf32>
    %24 = vector.broadcast %18 : vector<1x128xf32> to vector<128x128xf32>
    %25 = arith.mulf %23, %24 : vector<128x128xf32>
    %26 = vector.broadcast %21 : vector<1x128xf32> to vector<128x128xf32>
    %27 = arith.addf %25, %26 : vector<128x128xf32>
    %cst_14 = arith.constant 0.000000e+00 : f32
    %28 = vector.broadcast %cst_14 : f32 to vector<128x128xf32>
    %29 = arith.maximumf %27, %28 : vector<128x128xf32>
    %30 = arith.truncf %29 : vector<128x128xf32> to vector<128x128xbf16>
    %c0_15 = arith.constant 0 : index
    %c0_16 = arith.constant 0 : index
    %31 = vector.load %arg7[%c0_15, %c0_16] : memref<128x128xbf16, #tpu.memory_space<vmem>>, vector<128x128xbf16>
    tpu.vector_store %arg7[%c0_15, %c0_16], %30 {strides = array<i32>} : memref<128x128xbf16, #tpu.memory_space<vmem>>, vector<128x128xbf16>,
    return
  }
  func.func @transform_0(%arg0: i32, %arg1: i32) -> (i32, i32) {
    %c0_i32 = arith.constant 0 : i32
    return %arg0, %arg1 : i32, i32
  }
  func.func @transform_1(%arg0: i32, %arg1: i32) -> (i32, i32) {
    %c0_i32 = arith.constant 0 : i32
    %c0_i32_0 = arith.constant 0 : i32
    return %c0_i32, %arg1 : i32, i32
  }
  func.func @transform_2(%arg0: i32, %arg1: i32) -> (i32, i32) {
    %c0_i32 = arith.constant 0 : i32
    %c0_i32_0 = arith.constant 0 : i32
    return %c0_i32, %arg1 : i32, i32
  }
  func.func @transform_3(%arg0: i32, %arg1: i32) -> (i32, i32) {
    %c0_i32 = arith.constant 0 : i32
    %c0_i32_0 = arith.constant 0 : i32
    return %c0_i32, %arg1 : i32, i32
  }
  func.func @transform_4(%arg0: i32, %arg1: i32) -> (i32, i32) {
    %c0_i32 = arith.constant 0 : i32
    %c0_i32_0 = arith.constant 0 : i32
    return %c0_i32, %arg1 : i32, i32
  }
  func.func @transform_5(%arg0: i32, %arg1: i32) -> (i32, i32) {
    %c0_i32 = arith.constant 0 : i32
    return %arg0, %arg1 : i32, i32
  }
}

module attributes {stable_mosaic.version = 11 : i64} {
  func.func @_matmul_stats_kernel(%arg0: i32, %arg1: i32, %arg2: i32, %arg3: memref<128x256xbf16, #tpu.memory_space<vmem>>, %arg4: memref<256x128xbf16, #tpu.memory_space<vmem>>, %arg5: memref<128x128xbf16, #tpu.memory_space<vmem>>, %arg6: memref<8x128xf32, #tpu.memory_space<vmem>>, %arg7: memref<8x128xf32, #tpu.memory_space<vmem>>, %arg8: memref<128x128xf32, #tpu.memory_space<vmem>>) attributes {dimension_semantics = [#tpu.dimension_semantics<parallel>, #tpu.dimension_semantics<parallel>, #tpu.dimension_semantics<arbitrary>], iteration_bounds = array<i64: 1, 1, 1>, scalar_prefetch = 0 : i64, scratch_operands = 1 : i64, tpu.core_type = #tpu.core_type<tc>, window_params = [{transform_indices = @transform_0, window_bounds = array<i64: 128, 256>}, {transform_indices = @transform_1, window_bounds = array<i64: 256, 128>}, {transform_indices = @transform_2, window_bounds = array<i64: 128, 128>}, {transform_indices = @transform_3, window_bounds = array<i64: 8, 128>}, {transform_indices = @transform_4, window_bounds = array<i64: 8, 128>}]} {
    %c0_i32 = arith.constant 0 : i32
    %0 = arith.cmpi eq, %arg2, %c0_i32 : i32
    %1 = arith.extui %0 : i1 to i32
    %c0_i32_0 = arith.constant 0 : i32
    %2 = arith.cmpi ne, %1, %c0_i32_0 : i32
    scf.if %2 {
      %cst_10 = arith.constant 0.000000e+00 : f32
      %12 = vector.broadcast %cst_10 : f32 to vector<128x128xf32>
      %c0_11 = arith.constant 0 : index
      %c0_12 = arith.constant 0 : index
      %13 = vector.load %arg8[%c0_11, %c0_12] : memref<128x128xf32, #tpu.memory_space<vmem>>, vector<128x128xf32>
      tpu.vector_store %arg8[%c0_11, %c0_12], %12 {strides = array<i32>} : memref<128x128xf32, #tpu.memory_space<vmem>>, vector<128x128xf32>,
    } else {
    }
    %c0 = arith.constant 0 : index
    %c0_1 = arith.constant 0 : index
    %3 = vector.load %arg8[%c0, %c0_1] : memref<128x128xf32, #tpu.memory_space<vmem>>, vector<128x128xf32>
    %c0_2 = arith.constant 0 : index
    %c0_3 = arith.constant 0 : index
    %4 = vector.load %arg3[%c0_2, %c0_3] : memref<128x256xbf16, #tpu.memory_space<vmem>>, vector<128x256xbf16>
    %c0_4 = arith.constant 0 : index
    %c0_5 = arith.constant 0 : index
    %5 = vector.load %arg4[%c0_4, %c0_5] : memref<256x128xbf16, #tpu.memory_space<vmem>>, vector<256x128xbf16>
    %cst = arith.constant dense<0.000000e+00> : vector<128x128xf32>
    %6 = tpu.matmul %4, %5, %cst {dimension_numbers = #tpu.dot_dimension_numbers<[1], [0], [0], [1], [0, 0, 1, 1], [], []>} : vector<128x256xbf16>, vector<256x128xbf16>, vector<128x128xf32> -> vector<128x128xf32>
    %7 = arith.addf %3, %6 : vector<128x128xf32>
    %c0_6 = arith.constant 0 : index
    %c0_7 = arith.constant 0 : index
    %8 = vector.load %arg8[%c0_6, %c0_7] : memref<128x128xf32, #tpu.memory_space<vmem>>, vector<128x128xf32>
    tpu.vector_store %arg8[%c0_6, %c0_7], %7 {strides = array<i32>} : memref<128x128xf32, #tpu.memory_space<vmem>>, vector<128x128xf32>,
    %c0_i32_8 = arith.constant 0 : i32
    %9 = arith.cmpi eq, %arg2, %c0_i32_8 : i32
    %10 = arith.extui %9 : i1 to i32
    %c0_i32_9 = arith.constant 0 : i32
    %11 = arith.cmpi ne, %10, %c0_i32_9 : i32
    scf.if %11 {
      %c0_10 = arith.constant 0 : index
      %c0_11 = arith.constant 0 : index
      %12 = vector.load %arg8[%c0_10, %c0_11] : memref<128x128xf32, #tpu.memory_space<vmem>>, vector<128x128xf32>
      %13 = arith.truncf %12 : vector<128x128xf32> to vector<128x128xbf16>
      %c0_12 = arith.constant 0 : index
      %c0_13 = arith.constant 0 : index
      %14 = vector.load %arg5[%c0_12, %c0_13] : memref<128x128xbf16, #tpu.memory_space<vmem>>, vector<128x128xbf16>
      tpu.vector_store %arg5[%c0_12, %c0_13], %13 {strides = array<i32>} : memref<128x128xbf16, #tpu.memory_space<vmem>>, vector<128x128xbf16>,
      %cst_14 = arith.constant dense<0.000000e+00> : vector<128xf32>
      %15 = vector.multi_reduction <add>, %12, %cst_14 [0] : vector<128x128xf32> to vector<128xf32>
      %16 = vector.shape_cast %15 : vector<128xf32> to vector<1x128xf32>
      %17 = vector.shape_cast %16 : vector<1x128xf32> to vector<1x128xf32>
      %18 = vector.broadcast %17 : vector<1x128xf32> to vector<8x128xf32>
      %c0_15 = arith.constant 0 : index
      %c0_16 = arith.constant 0 : index
      %19 = vector.load %arg6[%c0_15, %c0_16] : memref<8x128xf32, #tpu.memory_space<vmem>>, vector<8x128xf32>
      tpu.vector_store %arg6[%c0_15, %c0_16], %18 {strides = array<i32>} : memref<8x128xf32, #tpu.memory_space<vmem>>, vector<8x128xf32>,
      %20 = arith.mulf %12, %12 : vector<128x128xf32>
      %cst_17 = arith.constant dense<0.000000e+00> : vector<128xf32>
      %21 = vector.multi_reduction <add>, %20, %cst_17 [0] : vector<128x128xf32> to vector<128xf32>
      %22 = vector.shape_cast %21 : vector<128xf32> to vector<1x128xf32>
      %23 = vector.shape_cast %22 : vector<1x128xf32> to vector<1x128xf32>
      %24 = vector.broadcast %23 : vector<1x128xf32> to vector<8x128xf32>
      %c0_18 = arith.constant 0 : index
      %c0_19 = arith.constant 0 : index
      %25 = vector.load %arg7[%c0_18, %c0_19] : memref<8x128xf32, #tpu.memory_space<vmem>>, vector<8x128xf32>
      tpu.vector_store %arg7[%c0_18, %c0_19], %24 {strides = array<i32>} : memref<8x128xf32, #tpu.memory_space<vmem>>, vector<8x128xf32>,
    } else {
    }
    return
  }
  func.func @transform_0(%arg0: i32, %arg1: i32, %arg2: i32) -> (i32, i32) {
    %c0_i32 = arith.constant 0 : i32
    return %arg0, %arg2 : i32, i32
  }
  func.func @transform_1(%arg0: i32, %arg1: i32, %arg2: i32) -> (i32, i32) {
    %c0_i32 = arith.constant 0 : i32
    return %arg2, %arg1 : i32, i32
  }
  func.func @transform_2(%arg0: i32, %arg1: i32, %arg2: i32) -> (i32, i32) {
    %c0_i32 = arith.constant 0 : i32
    return %arg0, %arg1 : i32, i32
  }
  func.func @transform_3(%arg0: i32, %arg1: i32, %arg2: i32) -> (i32, i32) {
    %c0_i32 = arith.constant 0 : i32
    return %arg0, %arg1 : i32, i32
  }
  func.func @transform_4(%arg0: i32, %arg1: i32, %arg2: i32) -> (i32, i32) {
    %c0_i32 = arith.constant 0 : i32
    return %arg0, %arg1 : i32, i32
  }
}

module attributes {stable_mosaic.version = 11 : i64} {
  func.func @_colstats_kernel(%arg0: i32, %arg1: i32, %arg2: memref<128x128xbf16, #tpu.memory_space<vmem>>, %arg3: memref<8x128xf32, #tpu.memory_space<vmem>>, %arg4: memref<8x128xf32, #tpu.memory_space<vmem>>) attributes {dimension_semantics = [#tpu.dimension_semantics<parallel>, #tpu.dimension_semantics<parallel>], iteration_bounds = array<i64: 1, 1>, scalar_prefetch = 0 : i64, scratch_operands = 0 : i64, tpu.core_type = #tpu.core_type<tc>, window_params = [{transform_indices = @transform_0, window_bounds = array<i64: 128, 128>}, {transform_indices = @transform_1, window_bounds = array<i64: 8, 128>}, {transform_indices = @transform_2, window_bounds = array<i64: 8, 128>}]} {
    %c0 = arith.constant 0 : index
    %c0_0 = arith.constant 0 : index
    %0 = vector.load %arg2[%c0, %c0_0] : memref<128x128xbf16, #tpu.memory_space<vmem>>, vector<128x128xbf16>
    %1 = arith.extf %0 : vector<128x128xbf16> to vector<128x128xf32>
    %cst = arith.constant dense<0.000000e+00> : vector<128xf32>
    %2 = vector.multi_reduction <add>, %1, %cst [0] : vector<128x128xf32> to vector<128xf32>
    %3 = vector.shape_cast %2 : vector<128xf32> to vector<1x128xf32>
    %4 = vector.shape_cast %3 : vector<1x128xf32> to vector<1x128xf32>
    %5 = vector.broadcast %4 : vector<1x128xf32> to vector<8x128xf32>
    %c0_1 = arith.constant 0 : index
    %c0_2 = arith.constant 0 : index
    %6 = vector.load %arg3[%c0_1, %c0_2] : memref<8x128xf32, #tpu.memory_space<vmem>>, vector<8x128xf32>
    tpu.vector_store %arg3[%c0_1, %c0_2], %5 {strides = array<i32>} : memref<8x128xf32, #tpu.memory_space<vmem>>, vector<8x128xf32>,
    %7 = arith.mulf %1, %1 : vector<128x128xf32>
    %cst_3 = arith.constant dense<0.000000e+00> : vector<128xf32>
    %8 = vector.multi_reduction <add>, %7, %cst_3 [0] : vector<128x128xf32> to vector<128xf32>
    %9 = vector.shape_cast %8 : vector<128xf32> to vector<1x128xf32>
    %10 = vector.shape_cast %9 : vector<1x128xf32> to vector<1x128xf32>
    %11 = vector.broadcast %10 : vector<1x128xf32> to vector<8x128xf32>
    %c0_4 = arith.constant 0 : index
    %c0_5 = arith.constant 0 : index
    %12 = vector.load %arg4[%c0_4, %c0_5] : memref<8x128xf32, #tpu.memory_space<vmem>>, vector<8x128xf32>
    tpu.vector_store %arg4[%c0_4, %c0_5], %11 {strides = array<i32>} : memref<8x128xf32, #tpu.memory_space<vmem>>, vector<8x128xf32>,
    return
  }
  func.func @transform_0(%arg0: i32, %arg1: i32) -> (i32, i32) {
    %c0_i32 = arith.constant 0 : i32
    return %arg0, %arg1 : i32, i32
  }
  func.func @transform_1(%arg0: i32, %arg1: i32) -> (i32, i32) {
    %c0_i32 = arith.constant 0 : i32
    return %arg0, %arg1 : i32, i32
  }
  func.func @transform_2(%arg0: i32, %arg1: i32) -> (i32, i32) {
    %c0_i32 = arith.constant 0 : i32
    return %arg0, %arg1 : i32, i32
  }
}

</mosaic_0001>

<llo_original>
// kernel: densenet3_forward.47
$region0: #{densenet3_forward.47}
  #allocation0 [shape = 'u32[]', space=smem, size = 0x4, offset = 0x4, fixed_abs, tag = 'smem constant byte address 0x4 - core index']
  #allocation1 [shape = 'u32[144,128]{1,0:T(1,128)}', space=vmem, size = 0x12000, scoped, tag = 'internal scratch']
  %s0 = inlined_call_operand.vmem [shape: bf16[128,128], index: 0, kind: input, shape index: {}]
  %s1 = inlined_call_operand.vmem [shape: f32[8,128], index: 1, kind: input, shape index: {}]
  %s2 = inlined_call_operand.vmem [shape: f32[8,128], index: 2, kind: input, shape index: {}]
  %s3 = inlined_call_operand.vmem [shape: f32[1,128], index: 3, kind: input, shape index: {}]
  %s4 = inlined_call_operand.vmem [shape: f32[1,128], index: 4, kind: input, shape index: {}]
  %s5 = inlined_call_operand.vmem [shape: bf16[128,128], index: 5, kind: output, shape index: {}]
  %s6 = sld [smem:[#allocation0]]
  $region30: #{densenet3_forward.47} parent=0
    _
  %s8 = ssub.s32 1, %s6
  %s9 = scalar_select 0, %s8, %s6
  // Predicated region
  $region2: #{densenet3_forward.47} parent=0 // pred_check
    _
  $region3: #{densenet3_forward.47} parent=0 // pred_check_branch
    %11 = sbr.rel (0) target = $region5
  $region4: #{densenet3_forward.47} parent=0 // pred_region
    _
  $region5: #{densenet3_forward.47} parent=0 // pred_fallthru
    _
  // Predicated region
  $region6: #{densenet3_forward.47} parent=0 // pred_check
    _
  $region7: #{densenet3_forward.47} parent=0 // pred_check_branch
    %13 = sbr.rel (0) target = $region9
  $region8: #{densenet3_forward.47} parent=0 // pred_region
    _
  $region9: #{densenet3_forward.47} parent=0 // pred_fallthru
    _
  // Predicated region
  $region10: #{densenet3_forward.47} parent=0 // pred_check
    _
  $region11: #{densenet3_forward.47} parent=0 // pred_check_branch
    %15 = sbr.rel (0) target = $region13
  $region12: #{densenet3_forward.47} parent=0 // pred_region
    _
  $region13: #{densenet3_forward.47} parent=0 // pred_fallthru
    _
  // Predicated region
  $region14: #{densenet3_forward.47} parent=0 // pred_check
    _
  $region15: #{densenet3_forward.47} parent=0 // pred_check_branch
    %17 = sbr.rel (0) target = $region17
  $region16: #{densenet3_forward.47} parent=0 // pred_region
    _
  $region17: #{densenet3_forward.47} parent=0 // pred_fallthru
    _
  // Predicated region
  $region18: #{densenet3_forward.47} parent=0 // pred_check
    _
  $region19: #{densenet3_forward.47} parent=0 // pred_check_branch
    %19 = sbr.rel (0) target = $region21
  $region20: #{densenet3_forward.47} parent=0 // pred_region
    _
  $region21: #{densenet3_forward.47} parent=0 // pred_fallthru
    _
  %v20 = vld [vmem:[%s1] sm:$0xff]
  %v21 = vrot.slane %v20, 4
  %v22 = vadd.f32 %v20, %v21
  %v23 = vrot.slane %v22, 2
  %v24 = vadd.f32 %v22, %v23
  %v25 = vrot.slane %v24, 1
  %v26 = vadd.f32 %v24, %v25
  %v27 = vmul.f32 %v26, 0.0009765625
  %v28 = vld [vmem:[%s2] sm:$0xff]
  %v29 = vrot.slane %v28, 4
  %v30 = vadd.f32 %v28, %v29
  %v31 = vrot.slane %v30, 2
  %v32 = vadd.f32 %v30, %v31
  %v33 = vrot.slane %v32, 1
  %v34 = vadd.f32 %v32, %v33
  %v35 = vmul.f32 %v34, 0.0009765625
  %v36 = vmul.f32 %v27, %v27
  %v37 = vsub.f32 %v35, %v36
  %v38 = vmax.f32 %v37, 0.0
  %v39 = vld [vmem:[%s3] sm:$0x1]
  %v40 = vadd.f32 %v38, 1e-05
  %v41 = vrsqrt.pop %v40
  %v42 = vmul.f32 %v39, %v41
  %v43 = vld [vmem:[%s4] sm:$0x1]
  %v44 = vmul.f32 %v27, %v42
  %v45 = vsub.f32 %v43, %v44
  %v46 = vld [vmem:[%s0] sm:$0xf]
  %v47 = vld [vmem:[%s0 + $0x4] sm:$0xf]
  %v48 = vld [vmem:[%s0 + $0x8] sm:$0xf]
  %v49 = vld [vmem:[%s0 + $0xc] sm:$0xf]
  %v50 = vld [vmem:[%s0 + $0x10] sm:$0xf]
  %v51 = vld [vmem:[%s0 + $0x14] sm:$0xf]
  %v52 = vld [vmem:[%s0 + $0x18] sm:$0xf]
  %v53 = vld [vmem:[%s0 + $0x1c] sm:$0xf]
  %v54 = vld [vmem:[%s0 + $0x20] sm:$0xf]
  %v55 = vld [vmem:[%s0 + $0x24] sm:$0xf]
  %v56 = vld [vmem:[%s0 + $0x28] sm:$0xf]
  %v57 = vld [vmem:[%s0 + $0x2c] sm:$0xf]
  %v58 = vld [vmem:[%s0 + $0x30] sm:$0xf]
  %v59 = vld [vmem:[%s0 + $0x34] sm:$0xf]
  %v60 = vld [vmem:[%s0 + $0x38] sm:$0xf]
  %v61 = vld [vmem:[%s0 + $0x3c] sm:$0xf]
  %v62 = vunpack.c.l.bf16 %v46
  %v63 = vunpack.c.l.bf16 %v47
  %v64 = vunpack.c.l.bf16 %v48
  %v65 = vunpack.c.l.bf16 %v49
  %v66 = vunpack.c.l.bf16 %v50
  %v67 = vunpack.c.l.bf16 %v51
  %v68 = vunpack.c.l.bf16 %v52
  %v69 = vunpack.c.l.bf16 %v53
  %v70 = vunpack.c.l.bf16 %v54
  %v71 = vunpack.c.l.bf16 %v55
  %v72 = vunpack.c.l.bf16 %v56
  %v73 = vunpack.c.l.bf16 %v57
  %v74 = vunpack.c.l.bf16 %v58
  %v75 = vunpack.c.l.bf16 %v59
  %v76 = vunpack.c.l.bf16 %v60
  %v77 = vunpack.c.l.bf16 %v61
  %v79 = vlaneseq
  %v80 = vshrl.u32 %v79, 7
  %v81 = vsub.s32 0, %v80
  %v82 = vrot.slane %v42, %v81
  %v84 = vmul.f32 %v62, %v82
  %v85 = vmul.f32 %v63, %v82
  %v86 = vmul.f32 %v64, %v82
  %v87 = vmul.f32 %v65, %v82
  %v88 = vmul.f32 %v66, %v82
  %v89 = vmul.f32 %v67, %v82
  %v90 = vmul.f32 %v68, %v82
  %v91 = vmul.f32 %v69, %v82
  %v92 = vmul.f32 %v70, %v82
  %v93 = vmul.f32 %v71, %v82
  %v94 = vmul.f32 %v72, %v82
  %v95 = vmul.f32 %v73, %v82
  %v96 = vmul.f32 %v74, %v82
  %v97 = vmul.f32 %v75, %v82
  %v98 = vmul.f32 %v76, %v82
  %v99 = vmul.f32 %v77, %v82
  %v101 = vlaneseq
  %v102 = vshrl.u32 %v101, 7
  %v103 = vsub.s32 0, %v102
  %v104 = vrot.slane %v45, %v103
  %v106 = vadd.f32 %v84, %v104
  %v107 = vadd.f32 %v85, %v104
  %v108 = vadd.f32 %v86, %v104
  %v109 = vadd.f32 %v87, %v104
  %v110 = vadd.f32 %v88, %v104
  %v111 = vadd.f32 %v89, %v104
  %v112 = vadd.f32 %v90, %v104
  %v113 = vadd.f32 %v91, %v104
  %v114 = vadd.f32 %v92, %v104
  %v115 = vadd.f32 %v93, %v104
  %v116 = vadd.f32 %v94, %v104
  %v117 = vadd.f32 %v95, %v104
  %v118 = vadd.f32 %v96, %v104
  %v119 = vadd.f32 %v97, %v104
  %v120 = vadd.f32 %v98, %v104
  %v121 = vadd.f32 %v99, %v104
  %v122 = vmax.f32 %v106, 0.0
  %v123 = vmax.f32 %v107, 0.0
  %v124 = vmax.f32 %v108, 0.0
  %v125 = vmax.f32 %v109, 0.0
  %v126 = vmax.f32 %v110, 0.0
  %v127 = vmax.f32 %v111, 0.0
  %v128 = vmax.f32 %v112, 0.0
  %v129 = vmax.f32 %v113, 0.0
  %v130 = vmax.f32 %v114, 0.0
  %v131 = vmax.f32 %v115, 0.0
  %v132 = vmax.f32 %v116, 0.0
  %v133 = vmax.f32 %v117, 0.0
  %v134 = vmax.f32 %v118, 0.0
  %v135 = vmax.f32 %v119, 0.0
  %v136 = vmax.f32 %v120, 0.0
  %v137 = vmax.f32 %v121, 0.0
  %v138 = vpack.c.bf16 %v123, %v122
  %v139 = vpack.c.bf16 %v125, %v124
  %v140 = vpack.c.bf16 %v127, %v126
  %v141 = vpack.c.bf16 %v129, %v128
  %v142 = vpack.c.bf16 %v131, %v130
  %v143 = vpack.c.bf16 %v133, %v132
  %v144 = vpack.c.bf16 %v135, %v134
  %v145 = vpack.c.bf16 %v137, %v136
  %v154 = vunpack.c.l.b16 %v138
  %v155 = vunpack.c.h.b16 %v138
  %v156 = vunpack.c.l.b16 %v139
  %v157 = vunpack.c.h.b16 %v139
  %v158 = vunpack.c.l.b16 %v140
  %v159 = vunpack.c.h.b16 %v140
  %v160 = vunpack.c.l.b16 %v141
  %v161 = vunpack.c.h.b16 %v141
  %v162 = vunpack.c.l.b16 %v142
  %v163 = vunpack.c.h.b16 %v142
  %v164 = vunpack.c.l.b16 %v143
  %v165 = vunpack.c.h.b16 %v143
  %v166 = vunpack.c.l.b16 %v144
  %v167 = vunpack.c.h.b16 %v144
  %v168 = vunpack.c.l.b16 %v145
  %v169 = vunpack.c.h.b16 %v145
  %v170 = vpack.c.b16 %v154, %v154
  %v171 = vpack.c.b16 %v155, %v155
  %v172 = vpack.c.b16 %v156, %v156
  %v173 = vpack.c.b16 %v157, %v157
  %v174 = vpack.c.b16 %v158, %v158
  %v175 = vpack.c.b16 %v159, %v159
  %v176 = vpack.c.b16 %v160, %v160
  %v177 = vpack.c.b16 %v161, %v161
  %v178 = vpack.c.b16 %v162, %v162
  %v179 = vpack.c.b16 %v163, %v163
  %v180 = vpack.c.b16 %v164, %v164
  %v181 = vpack.c.b16 %v165, %v165
  %v182 = vpack.c.b16 %v166, %v166
  %v183 = vpack.c.b16 %v167, %v167
  %v184 = vpack.c.b16 %v168, %v168
  %v185 = vpack.c.b16 %v169, %v169
  %202 = vst [vmem:[%s5] sm:$0xf] %v170
  %203 = vst [vmem:[%s5 + $0x4] sm:$0xf] %v171
  %204 = vst [vmem:[%s5 + $0x8] sm:$0xf] %v172
  %205 = vst [vmem:[%s5 + $0xc] sm:$0xf] %v173
  %206 = vst [vmem:[%s5 + $0x10] sm:$0xf] %v174
  %207 = vst [vmem:[%s5 + $0x14] sm:$0xf] %v175
  %208 = vst [vmem:[%s5 + $0x18] sm:$0xf] %v176
  %209 = vst [vmem:[%s5 + $0x1c] sm:$0xf] %v177
  %210 = vst [vmem:[%s5 + $0x20] sm:$0xf] %v178
  %211 = vst [vmem:[%s5 + $0x24] sm:$0xf] %v179
  %212 = vst [vmem:[%s5 + $0x28] sm:$0xf] %v180
  %213 = vst [vmem:[%s5 + $0x2c] sm:$0xf] %v181
  %214 = vst [vmem:[%s5 + $0x30] sm:$0xf] %v182
  %215 = vst [vmem:[%s5 + $0x34] sm:$0xf] %v183
  %216 = vst [vmem:[%s5 + $0x38] sm:$0xf] %v184
  %217 = vst [vmem:[%s5 + $0x3c] sm:$0xf] %v185
  // Predicated region
  $region22: #{densenet3_forward.47} parent=0 // pred_check
    _
  $region23: #{densenet3_forward.47} parent=0 // pred_check_branch
    %219 = sbr.rel (0) target = $region25
  $region24: #{densenet3_forward.47} parent=0 // pred_region
    _
  $region25: #{densenet3_forward.47} parent=0 // pred_fallthru
    _
  // Predicated region
  $region26: #{densenet3_forward.47} parent=0 // pred_check
    _
  $region27: #{densenet3_forward.47} parent=0 // pred_check_branch
    %221 = sbr.rel (0) target = $region29
  $region28: #{densenet3_forward.47} parent=0 // pred_region
    _
  $region29: #{densenet3_forward.47} parent=0 // pred_fallthru
    _

// kernel: densenet3_forward.46
$region0: #{densenet3_forward.46}
  #allocation0 [shape = 'u32[]', space=smem, size = 0x4, offset = 0x4, fixed_abs, tag = 'smem constant byte address 0x4 - core index']
  #allocation1 [shape = 'u32[144,128]{1,0:T(1,128)}', space=vmem, size = 0x12000, scoped, tag = 'internal scratch']
  #allocation2 [shape = 'f32[128,128]{1,0:T(8,128)}', space=vmem, size = 0x10000, scoped, tag = 'scratch operand']
  %s0 = inlined_call_operand.vmem [shape: bf16[128,128], index: 0, kind: input, shape index: {}]
  %s1 = inlined_call_operand.vmem [shape: bf16[128,128], index: 1, kind: input, shape index: {}]
  %s2 = inlined_call_operand.vmem [shape: bf16[128,128], index: 2, kind: output, shape index: {0}]
  %s3 = inlined_call_operand.vmem [shape: f32[8,128], index: 3, kind: output, shape index: {1}]
  %s4 = inlined_call_operand.vmem [shape: f32[8,128], index: 4, kind: output, shape index: {2}]
  %5 = xla_tuple %s2, %s3, %s4
  %s6 = sld [smem:[#allocation0]]
  $region42: #{densenet3_forward.46} parent=0
    _
  %s8 = ssub.s32 1, %s6
  %s9 = scalar_select 0, %s8, %s6
  // Predicated region
  $region2: #{densenet3_forward.46} parent=0 // pred_check
    _
  $region3: #{densenet3_forward.46} parent=0 // pred_check_branch
    %11 = sbr.rel (0) target = $region5
  $region4: #{densenet3_forward.46} parent=0 // pred_region
    _
  $region5: #{densenet3_forward.46} parent=0 // pred_fallthru
    _
  // Predicated region
  $region6: #{densenet3_forward.46} parent=0 // pred_check
    _
  $region7: #{densenet3_forward.46} parent=0 // pred_check_branch
    %13 = sbr.rel (0) target = $region9
  $region8: #{densenet3_forward.46} parent=0 // pred_region
    _
  $region9: #{densenet3_forward.46} parent=0 // pred_fallthru
    _
  %p15 = scmp.eq.s32.totalorder 0, 0
  // Predicated region
  $region10: #{densenet3_forward.46} parent=0 // pred_check
    %p16 = pneg %p15
  $region11: #{densenet3_forward.46} parent=0 // pred_check_branch
    %18 = sbr.rel (%p16) target = $region13
  $region12: #{densenet3_forward.46} parent=0 // pred_region
    %19 = vst [vmem:[#allocation2] sm:$0xff] 0.0
    %20 = vst [vmem:[#allocation2 + $0x8] sm:$0xff] 0.0
    %21 = vst [vmem:[#allocation2 + $0x10] sm:$0xff] 0.0
    %22 = vst [vmem:[#allocation2 + $0x18] sm:$0xff] 0.0
    %23 = vst [vmem:[#allocation2 + $0x20] sm:$0xff] 0.0
    %24 = vst [vmem:[#allocation2 + $0x28] sm:$0xff] 0.0
    %25 = vst [vmem:[#allocation2 + $0x30] sm:$0xff] 0.0
    %26 = vst [vmem:[#allocation2 + $0x38] sm:$0xff] 0.0
    %27 = vst [vmem:[#allocation2 + $0x40] sm:$0xff] 0.0
    %28 = vst [vmem:[#allocation2 + $0x48] sm:$0xff] 0.0
    %29 = vst [vmem:[#allocation2 + $0x50] sm:$0xff] 0.0
    %30 = vst [vmem:[#allocation2 + $0x58] sm:$0xff] 0.0
    %31 = vst [vmem:[#allocation2 + $0x60] sm:$0xff] 0.0
    %32 = vst [vmem:[#allocation2 + $0x68] sm:$0xff] 0.0
    %33 = vst [vmem:[#allocation2 + $0x70] sm:$0xff] 0.0
    %34 = vst [vmem:[#allocation2 + $0x78] sm:$0xff] 0.0
  $region13: #{densenet3_forward.46} parent=0 // pred_fallthru
    _
  %v35 = vld [vmem:[#allocation2] sm:$0xff]
  %v36 = vld [vmem:[#allocation2 + $0x8] sm:$0xff]
  %v37 = vld [vmem:[#allocation2 + $0x10] sm:$0xff]
  %v38 = vld [vmem:[#allocation2 + $0x18] sm:$0xff]
  %v39 = vld [vmem:[#allocation2 + $0x20] sm:$0xff]
  %v40 = vld [vmem:[#allocation2 + $0x28] sm:$0xff]
  %v41 = vld [vmem:[#allocation2 + $0x30] sm:$0xff]
  %v42 = vld [vmem:[#allocation2 + $0x38] sm:$0xff]
  %v43 = vld [vmem:[#allocation2 + $0x40] sm:$0xff]
  %v44 = vld [vmem:[#allocation2 + $0x48] sm:$0xff]
  %v45 = vld [vmem:[#allocation2 + $0x50] sm:$0xff]
  %v46 = vld [vmem:[#allocation2 + $0x58] sm:$0xff]
  %v47 = vld [vmem:[#allocation2 + $0x60] sm:$0xff]
  %v48 = vld [vmem:[#allocation2 + $0x68] sm:$0xff]
  %v49 = vld [vmem:[#allocation2 + $0x70] sm:$0xff]
  %v50 = vld [vmem:[#allocation2 + $0x78] sm:$0xff]
  %v51 = vld [vmem:[%s0] sm:$0xf]
  %v52 = vld [vmem:[%s0 + $0x4] sm:$0xf]
  %v53 = vld [vmem:[%s0 + $0x8] sm:$0xf]
  %v54 = vld [vmem:[%s0 + $0xc] sm:$0xf]
  %v55 = vld [vmem:[%s0 + $0x10] sm:$0xf]
  %v56 = vld [vmem:[%s0 + $0x14] sm:$0xf]
  %v57 = vld [vmem:[%s0 + $0x18] sm:$0xf]
  %v58 = vld [vmem:[%s0 + $0x1c] sm:$0xf]
  %v59 = vld [vmem:[%s0 + $0x20] sm:$0xf]
  %v60 = vld [vmem:[%s0 + $0x24] sm:$0xf]
  %v61 = vld [vmem:[%s0 + $0x28] sm:$0xf]
  %v62 = vld [vmem:[%s0 + $0x2c] sm:$0xf]
  %v63 = vld [vmem:[%s0 + $0x30] sm:$0xf]
  %v64 = vld [vmem:[%s0 + $0x34] sm:$0xf]
  %v65 = vld [vmem:[%s0 + $0x38] sm:$0xf]
  %v66 = vld [vmem:[%s0 + $0x3c] sm:$0xf]
  %v67 = vld [vmem:[%s1] sm:$0xf]
  %v68 = vld [vmem:[%s1 + $0x4] sm:$0xf]
  %v69 = vld [vmem:[%s1 + $0x8] sm:$0xf]
  %v70 = vld [vmem:[%s1 + $0xc] sm:$0xf]
  %v71 = vld [vmem:[%s1 + $0x10] sm:$0xf]
  %v72 = vld [vmem:[%s1 + $0x14] sm:$0xf]
  %v73 = vld [vmem:[%s1 + $0x18] sm:$0xf]
  %v74 = vld [vmem:[%s1 + $0x1c] sm:$0xf]
  %v75 = vld [vmem:[%s1 + $0x20] sm:$0xf]
  %v76 = vld [vmem:[%s1 + $0x24] sm:$0xf]
  %v77 = vld [vmem:[%s1 + $0x28] sm:$0xf]
  %v78 = vld [vmem:[%s1 + $0x2c] sm:$0xf]
  %v79 = vld [vmem:[%s1 + $0x30] sm:$0xf]
  %v80 = vld [vmem:[%s1 + $0x34] sm:$0xf]
  %v81 = vld [vmem:[%s1 + $0x38] sm:$0xf]
  %v82 = vld [vmem:[%s1 + $0x3c] sm:$0xf]
  %v99 = vunpack.c.l.b16 %v51
  %v100 = vunpack.c.l.b16 %v52
  %v101 = vunpack.c.l.b16 %v53
  %v102 = vunpack.c.l.b16 %v54
  %v103 = vunpack.c.l.b16 %v55
  %v104 = vunpack.c.l.b16 %v56
  %v105 = vunpack.c.l.b16 %v57
  %v106 = vunpack.c.l.b16 %v58
  %v107 = vunpack.c.l.b16 %v59
  %v108 = vunpack.c.l.b16 %v60
  %v109 = vunpack.c.l.b16 %v61
  %v110 = vunpack.c.l.b16 %v62
  %v111 = vunpack.c.l.b16 %v63
  %v112 = vunpack.c.l.b16 %v64
  %v113 = vunpack.c.l.b16 %v65
  %v114 = vunpack.c.l.b16 %v66
  %v115 = vpack.c.b16 %v100, %v99
  %v116 = vpack.c.b16 %v102, %v101
  %v117 = vpack.c.b16 %v104, %v103
  %v118 = vpack.c.b16 %v106, %v105
  %v119 = vpack.c.b16 %v108, %v107
  %v120 = vpack.c.b16 %v110, %v109
  %v121 = vpack.c.b16 %v112, %v111
  %v122 = vpack.c.b16 %v114, %v113
  %v147 = vunpack.c.l.b16 %v67
  %v148 = vunpack.c.l.b16 %v68
  %v149 = vunpack.c.l.b16 %v69
  %v150 = vunpack.c.l.b16 %v70
  %v151 = vunpack.c.l.b16 %v71
  %v152 = vunpack.c.l.b16 %v72
  %v153 = vunpack.c.l.b16 %v73
  %v154 = vunpack.c.l.b16 %v74
  %v155 = vunpack.c.l.b16 %v75
  %v156 = vunpack.c.l.b16 %v76
  %v157 = vunpack.c.l.b16 %v77
  %v158 = vunpack.c.l.b16 %v78
  %v159 = vunpack.c.l.b16 %v79
  %v160 = vunpack.c.l.b16 %v80
  %v161 = vunpack.c.l.b16 %v81
  %v162 = vunpack.c.l.b16 %v82
  %v163 = vpack.c.b16 %v148, %v147
  %v164 = vpack.c.b16 %v150, %v149
  %v165 = vpack.c.b16 %v152, %v151
  %v166 = vpack.c.b16 %v154, %v153
  %v167 = vpack.c.b16 %v156, %v155
  %v168 = vpack.c.b16 %v158, %v157
  %v169 = vpack.c.b16 %v160, %v159
  %v170 = vpack.c.b16 %v162, %v161
  %179 = vmatprep.subr.bf16.mxu0 0
  %180 = vmatpush1.bf16.msra.mxu0 %v163
  %181 = vmatprep.subr.bf16.mxu0 0
  %182 = vmatpush1.bf16.msra.mxu0 %v164
  %183 = vmatprep.subr.bf16.mxu0 0
  %184 = vmatpush1.bf16.msra.mxu0 %v165
  %185 = vmatprep.subr.bf16.mxu0 0
  %186 = vmatpush1.bf16.msra.mxu0 %v166
  %187 = vmatprep.subr.bf16.mxu0 0
  %188 = vmatpush1.bf16.msra.mxu0 %v167
  %189 = vmatprep.subr.bf16.mxu0 0
  %190 = vmatpush1.bf16.msra.mxu0 %v168
  %191 = vmatprep.subr.bf16.mxu0 0
  %192 = vmatpush1.bf16.msra.mxu0 %v169
  %193 = vmatprep.subr.bf16.mxu0 0
  %194 = vmatpush1.bf16.msra.mxu0 %v170
  %195 = vmatprep.subr.bf16.mxu0 0
  %196 = vmatpush1.bf16.msra.mxu0 0
  %197 = vmatprep.subr.bf16.mxu0 0
  %198 = vmatpush1.bf16.msra.mxu0 0
  %199 = vmatprep.subr.bf16.mxu0 0
  %200 = vmatpush1.bf16.msra.mxu0 0
  %201 = vmatprep.subr.bf16.mxu0 0
  %202 = vmatpush1.bf16.msra.mxu0 0
  %203 = vmatprep.subr.bf16.mxu0 0
  %204 = vmatpush1.bf16.msra.mxu0 0
  %205 = vmatprep.subr.bf16.mxu0 0
  %206 = vmatpush1.bf16.msra.mxu0 0
  %207 = vmatprep.subr.bf16.mxu0 0
  %208 = vmatpush1.bf16.msra.mxu0 0
  %209 = vmatprep.subr.bf16.mxu0 0
  %210 = vmatpush1.bf16.msra.mxu0 0
  %211 = vmatprep.mubr.bf16.mxu0 0
  %212 = vmatmul.mubr.bf16.gmra.mrb[0].mxu0 %v115
  %v213 = vpop.f32.mrb[0].mxu0
  %v214 = vadd.f32 0.0, %v213
  %v215 = vpop.f32.mrb[0].mxu0
  %v216 = vpop.f32.mrb[0].mxu0
  %v217 = vadd.f32 0.0, %v216
  %v218 = vpop.f32.mrb[0].mxu0
  %219 = vmatprep.mubr.bf16.mxu0 0
  %220 = vmatmul.mubr.bf16.gmra.mrb[0].mxu0 %v116
  %v221 = vpop.f32.mrb[0].mxu0
  %v222 = vadd.f32 0.0, %v221
  %v223 = vpop.f32.mrb[0].mxu0
  %v224 = vpop.f32.mrb[0].mxu0
  %v225 = vadd.f32 0.0, %v224
  %v226 = vpop.f32.mrb[0].mxu0
  %227 = vmatprep.mubr.bf16.mxu0 0
  %228 = vmatmul.mubr.bf16.gmra.mrb[0].mxu0 %v117
  %v229 = vpop.f32.mrb[0].mxu0
  %v230 = vadd.f32 0.0, %v229
  %v231 = vpop.f32.mrb[0].mxu0
  %v232 = vpop.f32.mrb[0].mxu0
  %v233 = vadd.f32 0.0, %v232
  %v234 = vpop.f32.mrb[0].mxu0
  %235 = vmatprep.mubr.bf16.mxu0 0
  %236 = vmatmul.mubr.bf16.gmra.mrb[0].mxu0 %v118
  %v237 = vpop.f32.mrb[0].mxu0
  %v238 = vadd.f32 0.0, %v237
  %v239 = vpop.f32.mrb[0].mxu0
  %v240 = vpop.f32.mrb[0].mxu0
  %v241 = vadd.f32 0.0, %v240
  %v242 = vpop.f32.mrb[0].mxu0
  %243 = vmatprep.mubr.bf16.mxu0 0
  %244 = vmatmul.mubr.bf16.gmra.mrb[0].mxu0 %v119
  %v245 = vpop.f32.mrb[0].mxu0
  %v246 = vadd.f32 0.0, %v245
  %v247 = vpop.f32.mrb[0].mxu0
  %v248 = vpop.f32.mrb[0].mxu0
  %v249 = vadd.f32 0.0, %v248
  %v250 = vpop.f32.mrb[0].mxu0
  %251 = vmatprep.mubr.bf16.mxu0 0
  %252 = vmatmul.mubr.bf16.gmra.mrb[0].mxu0 %v120
  %v253 = vpop.f32.mrb[0].mxu0
  %v254 = vadd.f32 0.0, %v253
  %v255 = vpop.f32.mrb[0].mxu0
  %v256 = vpop.f32.mrb[0].mxu0
  %v257 = vadd.f32 0.0, %v256
  %v258 = vpop.f32.mrb[0].mxu0
  %259 = vmatprep.mubr.bf16.mxu0 0
  %260 = vmatmul.mubr.bf16.gmra.mrb[0].mxu0 %v121
  %v261 = vpop.f32.mrb[0].mxu0
  %v262 = vadd.f32 0.0, %v261
  %v263 = vpop.f32.mrb[0].mxu0
  %v264 = vpop.f32.mrb[0].mxu0
  %v265 = vadd.f32 0.0, %v264
  %v266 = vpop.f32.mrb[0].mxu0
  %267 = vmatprep.mubr.bf16.mxu0 0
  %268 = vmatmul.mubr.bf16.gmra.mrb[0].mxu0 %v122
  %v269 = vpop.f32.mrb[0].mxu0
  %v270 = vadd.f32 0.0, %v269
  %v271 = vpop.f32.mrb[0].mxu0
  %v272 = vpop.f32.mrb[0].mxu0
  %v273 = vadd.f32 0.0, %v272
  %v274 = vpop.f32.mrb[0].mxu0
  %275 = vdwg.mxu0
  %v276 = vadd.f32 %v35, %v214
  %v277 = vadd.f32 %v36, %v217
  %v278 = vadd.f32 %v37, %v222
  %v279 = vadd.f32 %v38, %v225
  %v280 = vadd.f32 %v39, %v230
  %v281 = vadd.f32 %v40, %v233
  %v282 = vadd.f32 %v41, %v238
  %v283 = vadd.f32 %v42, %v241
  %v284 = vadd.f32 %v43, %v246
  %v285 = vadd.f32 %v44, %v249
  %v286 = vadd.f32 %v45, %v254
  %v287 = vadd.f32 %v46, %v257
  %v288 = vadd.f32 %v47, %v262
  %v289 = vadd.f32 %v48, %v265
  %v290 = vadd.f32 %v49, %v270
  %v291 = vadd.f32 %v50, %v273
  %292 = vst [vmem:[#allocation2] sm:$0xff] %v276
  %293 = vst [vmem:[#allocation2 + $0x8] sm:$0xff] %v277
  %294 = vst [vmem:[#allocation2 + $0x10] sm:$0xff] %v278
  %295 = vst [vmem:[#allocation2 + $0x18] sm:$0xff] %v279
  %296 = vst [vmem:[#allocation2 + $0x20] sm:$0xff] %v280
  %297 = vst [vmem:[#allocation2 + $0x28] sm:$0xff] %v281
  %298 = vst [vmem:[#allocation2 + $0x30] sm:$0xff] %v282
  %299 = vst [vmem:[#allocation2 + $0x38] sm:$0xff] %v283
  %300 = vst [vmem:[#allocation2 + $0x40] sm:$0xff] %v284
  %301 = vst [vmem:[#allocation2 + $0x48] sm:$0xff] %v285
  %302 = vst [vmem:[#allocation2 + $0x50] sm:$0xff] %v286
  %303 = vst [vmem:[#allocation2 + $0x58] sm:$0xff] %v287
  %304 = vst [vmem:[#allocation2 + $0x60] sm:$0xff] %v288
  %305 = vst [vmem:[#allocation2 + $0x68] sm:$0xff] %v289
  %306 = vst [vmem:[#allocation2 + $0x70] sm:$0xff] %v290
  %307 = vst [vmem:[#allocation2 + $0x78] sm:$0xff] %v291
  // Predicated region
  $region14: #{densenet3_forward.46} parent=0 // pred_check
    %p308 = pneg %p15
  $region15: #{densenet3_forward.46} parent=0 // pred_check_branch
    %310 = sbr.rel (%p308) target = $region17
  $region16: #{densenet3_forward.46} parent=0 // pred_region
    %v311 = vld [vmem:[#allocation2] sm:$0xff]
    %v312 = vld [vmem:[#allocation2 + $0x8] sm:$0xff]
    %v313 = vld [vmem:[#allocation2 + $0x10] sm:$0xff]
    %v314 = vld [vmem:[#allocation2 + $0x18] sm:$0xff]
    %v315 = vld [vmem:[#allocation2 + $0x20] sm:$0xff]
    %v316 = vld [vmem:[#allocation2 + $0x28] sm:$0xff]
    %v317 = vld [vmem:[#allocation2 + $0x30] sm:$0xff]
    %v318 = vld [vmem:[#allocation2 + $0x38] sm:$0xff]
    %v319 = vld [vmem:[#allocation2 + $0x40] sm:$0xff]
    %v320 = vld [vmem:[#allocation2 + $0x48] sm:$0xff]
    %v321 = vld [vmem:[#allocation2 + $0x50] sm:$0xff]
    %v322 = vld [vmem:[#allocation2 + $0x58] sm:$0xff]
    %v323 = vld [vmem:[#allocation2 + $0x60] sm:$0xff]
    %v324 = vld [vmem:[#allocation2 + $0x68] sm:$0xff]
    %v325 = vld [vmem:[#allocation2 + $0x70] sm:$0xff]
    %v326 = vld [vmem:[#allocation2 + $0x78] sm:$0xff]
    %v327 = vpack.c.bf16 %v312, %v311
    %v328 = vpack.c.bf16 %v314, %v313
    %v329 = vpack.c.bf16 %v316, %v315
    %v330 = vpack.c.bf16 %v318, %v317
    %v331 = vpack.c.bf16 %v320, %v319
    %v332 = vpack.c.bf16 %v322, %v321
    %v333 = vpack.c.bf16 %v324, %v323
    %v334 = vpack.c.bf16 %v326, %v325
    %v343 = vunpack.c.l.b16 %v327
    %v344 = vunpack.c.h.b16 %v327
    %v345 = vunpack.c.l.b16 %v328
    %v346 = vunpack.c.h.b16 %v328
    %v347 = vunpack.c.l.b16 %v329
    %v348 = vunpack.c.h.b16 %v329
    %v349 = vunpack.c.l.b16 %v330
    %v350 = vunpack.c.h.b16 %v330
    %v351 = vunpack.c.l.b16 %v331
    %v352 = vunpack.c.h.b16 %v331
    %v353 = vunpack.c.l.b16 %v332
    %v354 = vunpack.c.h.b16 %v332
    %v355 = vunpack.c.l.b16 %v333
    %v356 = vunpack.c.h.b16 %v333
    %v357 = vunpack.c.l.b16 %v334
    %v358 = vunpack.c.h.b16 %v334
    %v359 = vpack.c.b16 %v343, %v343
    %v360 = vpack.c.b16 %v344, %v344
    %v361 = vpack.c.b16 %v345, %v345
    %v362 = vpack.c.b16 %v346, %v346
    %v363 = vpack.c.b16 %v347, %v347
    %v364 = vpack.c.b16 %v348, %v348
    %v365 = vpack.c.b16 %v349, %v349
    %v366 = vpack.c.b16 %v350, %v350
    %v367 = vpack.c.b16 %v351, %v351
    %v368 = vpack.c.b16 %v352, %v352
    %v369 = vpack.c.b16 %v353, %v353
    %v370 = vpack.c.b16 %v354, %v354
    %v371 = vpack.c.b16 %v355, %v355
    %v372 = vpack.c.b16 %v356, %v356
    %v373 = vpack.c.b16 %v357, %v357
    %v374 = vpack.c.b16 %v358, %v358
    %391 = vst [vmem:[%s2] sm:$0xf] %v359
    %392 = vst [vmem:[%s2 + $0x4] sm:$0xf] %v360
    %393 = vst [vmem:[%s2 + $0x8] sm:$0xf] %v361
    %394 = vst [vmem:[%s2 + $0xc] sm:$0xf] %v362
    %395 = vst [vmem:[%s2 + $0x10] sm:$0xf] %v363
    %396 = vst [vmem:[%s2 + $0x14] sm:$0xf] %v364
    %397 = vst [vmem:[%s2 + $0x18] sm:$0xf] %v365
    %398 = vst [vmem:[%s2 + $0x1c] sm:$0xf] %v366
    %399 = vst [vmem:[%s2 + $0x20] sm:$0xf] %v367
    %400 = vst [vmem:[%s2 + $0x24] sm:$0xf] %v368
    %401 = vst [vmem:[%s2 + $0x28] sm:$0xf] %v369
    %402 = vst [vmem:[%s2 + $0x2c] sm:$0xf] %v370
    %403 = vst [vmem:[%s2 + $0x30] sm:$0xf] %v371
    %404 = vst [vmem:[%s2 + $0x34] sm:$0xf] %v372
    %405 = vst [vmem:[%s2 + $0x38] sm:$0xf] %v373
    %406 = vst [vmem:[%s2 + $0x3c] sm:$0xf] %v374
    %v407 = vadd.f32 %v311, %v312
    %v408 = vadd.f32 %v407, %v313
    %v409 = vadd.f32 %v408, %v314
    %v410 = vadd.f32 %v409, %v315
    %v411 = vadd.f32 %v410, %v316
    %v412 = vadd.f32 %v411, %v317
    %v413 = vadd.f32 %v412, %v318
    %v414 = vadd.f32 %v413, %v319
    %v415 = vadd.f32 %v414, %v320
    %v416 = vadd.f32 %v415, %v321
    %v417 = vadd.f32 %v416, %v322
    %v418 = vadd.f32 %v417, %v323
    %v419 = vadd.f32 %v418, %v324
    %v420 = vadd.f32 %v419, %v325
    %v421 = vadd.f32 %v420, %v326
    %v422 = vrot.slane %v421, 4
    %v423 = vadd.f32 %v421, %v422
    %v424 = vrot.slane %v423, 2
    %v425 = vadd.f32 %v423, %v424
    %v426 = vrot.slane %v425, 1
    %v427 = vadd.f32 %v425, %v426
    %428 = vst [vmem:[%s3] sm:$0xff] %v427
    %v429 = vmul.f32 %v311, %v311
    %v430 = vmul.f32 %v312, %v312
    %v431 = vmul.f32 %v313, %v313
    %v432 = vmul.f32 %v314, %v314
    %v433 = vmul.f32 %v315, %v315
    %v434 = vmul.f32 %v316, %v316
    %v435 = vmul.f32 %v317, %v317
    %v436 = vmul.f32 %v318, %v318
    %v437 = vmul.f32 %v319, %v319
    %v438 = vmul.f32 %v320, %v320
    %v439 = vmul.f32 %v321, %v321
    %v440 = vmul.f32 %v322, %v322
    %v441 = vmul.f32 %v323, %v323
    %v442 = vmul.f32 %v324, %v324
    %v443 = vmul.f32 %v325, %v325
    %v444 = vmul.f32 %v326, %v326
    %v445 = vadd.f32 %v429, %v430
    %v446 = vadd.f32 %v445, %v431
    %v447 = vadd.f32 %v446, %v432
    %v448 = vadd.f32 %v447, %v433
    %v449 = vadd.f32 %v448, %v434
    %v450 = vadd.f32 %v449, %v435
    %v451 = vadd.f32 %v450, %v436
    %v452 = vadd.f32 %v451, %v437
    %v453 = vadd.f32 %v452, %v438
    %v454 = vadd.f32 %v453, %v439
    %v455 = vadd.f32 %v454, %v440
    %v456 = vadd.f32 %v455, %v441
    %v457 = vadd.f32 %v456, %v442
    %v458 = vadd.f32 %v457, %v443
    %v459 = vadd.f32 %v458, %v444
    %v460 = vrot.slane %v459, 4
    %v461 = vadd.f32 %v459, %v460
    %v462 = vrot.slane %v461, 2
    %v463 = vadd.f32 %v461, %v462
    %v464 = vrot.slane %v463, 1
    %v465 = vadd.f32 %v463, %v464
    %466 = vst [vmem:[%s4] sm:$0xff] %v465
  $region17: #{densenet3_forward.46} parent=0 // pred_fallthru
    _
  // Predicated region
  $region18: #{densenet3_forward.46} parent=0 // pred_check
    _
  $region19: #{densenet3_forward.46} parent=0 // pred_check_branch
    %468 = sbr.rel (0) target = $region21
  $region20: #{densenet3_forward.46} parent=0 // pred_region
    _
  $region21: #{densenet3_forward.46} parent=0 // pred_fallthru
    _
  // Predicated region
  $region22: #{densenet3_forward.46} parent=0 // pred_check
    _
  $region23: #{densenet3_forward.46} parent=0 // pred_check_branch
    %470 = sbr.rel (0) target = $region25
  $region24: #{densenet3_forward.46} parent=0 // pred_region
    _
  $region25: #{densenet3_forward.46} parent=0 // pred_fallthru
    _
  // Predicated region
  $region26: #{densenet3_forward.46} parent=0 // pred_check
    _
  $region27: #{densenet3_forward.46} parent=0 // pred_check_branch
    %472 = sbr.rel (0) target = $region29
  $region28: #{densenet3_forward.46} parent=0 // pred_region
    _
  $region29: #{densenet3_forward.46} parent=0 // pred_fallthru
    _
  // Predicated region
  $region30: #{densenet3_forward.46} parent=0 // pred_check
    _
  $region31: #{densenet3_forward.46} parent=0 // pred_check_branch
    %474 = sbr.rel (0) target = $region33
  $region32: #{densenet3_forward.46} parent=0 // pred_region
    _
  $region33: #{densenet3_forward.46} parent=0 // pred_fallthru
    _
  // Predicated region
  $region34: #{densenet3_forward.46} parent=0 // pred_check
    _
  $region35: #{densenet3_forward.46} parent=0 // pred_check_branch
    %476 = sbr.rel (0) target = $region37
  $region36: #{densenet3_forward.46} parent=0 // pred_region
    _
  $region37: #{densenet3_forward.46} parent=0 // pred_fallthru
    _
  // Predicated region
  $region38: #{densenet3_forward.46} parent=0 // pred_check
    _
  $region39: #{densenet3_forward.46} parent=0 // pred_check_branch
    %478 = sbr.rel (0) target = $region41
  $region40: #{densenet3_forward.46} parent=0 // pred_region
    _
  $region41: #{densenet3_forward.46} parent=0 // pred_fallthru
    _

// kernel: densenet3_forward.56
$region0: #{densenet3_forward.56}
  #allocation0 [shape = 'u32[]', space=smem, size = 0x4, offset = 0x4, fixed_abs, tag = 'smem constant byte address 0x4 - core index']
  #allocation1 [shape = 'u32[144,128]{1,0:T(1,128)}', space=vmem, size = 0x12000, scoped, tag = 'internal scratch']
  #allocation2 [shape = 'f32[128,128]{1,0:T(8,128)}', space=vmem, size = 0x10000, scoped, tag = 'scratch operand']
  %s0 = inlined_call_operand.vmem [shape: bf16[128,256], index: 0, kind: input, shape index: {}]
  %s1 = inlined_call_operand.vmem [shape: bf16[256,128], index: 1, kind: input, shape index: {}]
  %s2 = inlined_call_operand.vmem [shape: bf16[128,128], index: 2, kind: output, shape index: {0}]
  %s3 = inlined_call_operand.vmem [shape: f32[8,128], index: 3, kind: output, shape index: {1}]
  %s4 = inlined_call_operand.vmem [shape: f32[8,128], index: 4, kind: output, shape index: {2}]
  %5 = xla_tuple %s2, %s3, %s4
  %s6 = sld [smem:[#allocation0]]
  $region42: #{densenet3_forward.56} parent=0
    _
  %s8 = ssub.s32 1, %s6
  %s9 = scalar_select 0, %s8, %s6
  // Predicated region
  $region2: #{densenet3_forward.56} parent=0 // pred_check
    _
  $region3: #{densenet3_forward.56} parent=0 // pred_check_branch
    %11 = sbr.rel (0) target = $region5
  $region4: #{densenet3_forward.56} parent=0 // pred_region
    _
  $region5: #{densenet3_forward.56} parent=0 // pred_fallthru
    _
  // Predicated region
  $region6: #{densenet3_forward.56} parent=0 // pred_check
    _
  $region7: #{densenet3_forward.56} parent=0 // pred_check_branch
    %13 = sbr.rel (0) target = $region9
  $region8: #{densenet3_forward.56} parent=0 // pred_region
    _
  $region9: #{densenet3_forward.56} parent=0 // pred_fallthru
    _
  %p15 = scmp.eq.s32.totalorder 0, 0
  // Predicated region
  $region10: #{densenet3_forward.56} parent=0 // pred_check
    %p16 = pneg %p15
  $region11: #{densenet3_forward.56} parent=0 // pred_check_branch
    %18 = sbr.rel (%p16) target = $region13
  $region12: #{densenet3_forward.56} parent=0 // pred_region
    %19 = vst [vmem:[#allocation2] sm:$0xff] 0.0
    %20 = vst [vmem:[#allocation2 + $0x8] sm:$0xff] 0.0
    %21 = vst [vmem:[#allocation2 + $0x10] sm:$0xff] 0.0
    %22 = vst [vmem:[#allocation2 + $0x18] sm:$0xff] 0.0
    %23 = vst [vmem:[#allocation2 + $0x20] sm:$0xff] 0.0
    %24 = vst [vmem:[#allocation2 + $0x28] sm:$0xff] 0.0
    %25 = vst [vmem:[#allocation2 + $0x30] sm:$0xff] 0.0
    %26 = vst [vmem:[#allocation2 + $0x38] sm:$0xff] 0.0
    %27 = vst [vmem:[#allocation2 + $0x40] sm:$0xff] 0.0
    %28 = vst [vmem:[#allocation2 + $0x48] sm:$0xff] 0.0
    %29 = vst [vmem:[#allocation2 + $0x50] sm:$0xff] 0.0
    %30 = vst [vmem:[#allocation2 + $0x58] sm:$0xff] 0.0
    %31 = vst [vmem:[#allocation2 + $0x60] sm:$0xff] 0.0
    %32 = vst [vmem:[#allocation2 + $0x68] sm:$0xff] 0.0
    %33 = vst [vmem:[#allocation2 + $0x70] sm:$0xff] 0.0
    %34 = vst [vmem:[#allocation2 + $0x78] sm:$0xff] 0.0
  $region13: #{densenet3_forward.56} parent=0 // pred_fallthru
    _
  %v35 = vld [vmem:[#allocation2] sm:$0xff]
  %v36 = vld [vmem:[#allocation2 + $0x8] sm:$0xff]
  %v37 = vld [vmem:[#allocation2 + $0x10] sm:$0xff]
  %v38 = vld [vmem:[#allocation2 + $0x18] sm:$0xff]
  %v39 = vld [vmem:[#allocation2 + $0x20] sm:$0xff]
  %v40 = vld [vmem:[#allocation2 + $0x28] sm:$0xff]
  %v41 = vld [vmem:[#allocation2 + $0x30] sm:$0xff]
  %v42 = vld [vmem:[#allocation2 + $0x38] sm:$0xff]
  %v43 = vld [vmem:[#allocation2 + $0x40] sm:$0xff]
  %v44 = vld [vmem:[#allocation2 + $0x48] sm:$0xff]
  %v45 = vld [vmem:[#allocation2 + $0x50] sm:$0xff]
  %v46 = vld [vmem:[#allocation2 + $0x58] sm:$0xff]
  %v47 = vld [vmem:[#allocation2 + $0x60] sm:$0xff]
  %v48 = vld [vmem:[#allocation2 + $0x68] sm:$0xff]
  %v49 = vld [vmem:[#allocation2 + $0x70] sm:$0xff]
  %v50 = vld [vmem:[#allocation2 + $0x78] sm:$0xff]
  %v51 = vld [vmem:[%s0] sm:$0xff]
  %v52 = vld [vmem:[%s0 + $0x8] sm:$0xff]
  %v53 = vld [vmem:[%s0 + $0x10] sm:$0xff]
  %v54 = vld [vmem:[%s0 + $0x18] sm:$0xff]
  %v55 = vld [vmem:[%s0 + $0x20] sm:$0xff]
  %v56 = vld [vmem:[%s0 + $0x28] sm:$0xff]
  %v57 = vld [vmem:[%s0 + $0x30] sm:$0xff]
  %v58 = vld [vmem:[%s0 + $0x38] sm:$0xff]
  %v59 = vld [vmem:[%s0 + $0x40] sm:$0xff]
  %v60 = vld [vmem:[%s0 + $0x48] sm:$0xff]
  %v61 = vld [vmem:[%s0 + $0x50] sm:$0xff]
  %v62 = vld [vmem:[%s0 + $0x58] sm:$0xff]
  %v63 = vld [vmem:[%s0 + $0x60] sm:$0xff]
  %v64 = vld [vmem:[%s0 + $0x68] sm:$0xff]
  %v65 = vld [vmem:[%s0 + $0x70] sm:$0xff]
  %v66 = vld [vmem:[%s0 + $0x78] sm:$0xff]
  %v67 = vld [vmem:[%s1] sm:$0xf]
  %v68 = vld [vmem:[%s1 + $0x4] sm:$0xf]
  %v69 = vld [vmem:[%s1 + $0x8] sm:$0xf]
  %v70 = vld [vmem:[%s1 + $0xc] sm:$0xf]
  %v71 = vld [vmem:[%s1 + $0x10] sm:$0xf]
  %v72 = vld [vmem:[%s1 + $0x14] sm:$0xf]
  %v73 = vld [vmem:[%s1 + $0x18] sm:$0xf]
  %v74 = vld [vmem:[%s1 + $0x1c] sm:$0xf]
  %v75 = vld [vmem:[%s1 + $0x20] sm:$0xf]
  %v76 = vld [vmem:[%s1 + $0x24] sm:$0xf]
  %v77 = vld [vmem:[%s1 + $0x28] sm:$0xf]
  %v78 = vld [vmem:[%s1 + $0x2c] sm:$0xf]
  %v79 = vld [vmem:[%s1 + $0x30] sm:$0xf]
  %v80 = vld [vmem:[%s1 + $0x34] sm:$0xf]
  %v81 = vld [vmem:[%s1 + $0x38] sm:$0xf]
  %v82 = vld [vmem:[%s1 + $0x3c] sm:$0xf]
  %v83 = vld [vmem:[%s1 + $0x40] sm:$0xf]
  %v84 = vld [vmem:[%s1 + $0x44] sm:$0xf]
  %v85 = vld [vmem:[%s1 + $0x48] sm:$0xf]
  %v86 = vld [vmem:[%s1 + $0x4c] sm:$0xf]
  %v87 = vld [vmem:[%s1 + $0x50] sm:$0xf]
  %v88 = vld [vmem:[%s1 + $0x54] sm:$0xf]
  %v89 = vld [vmem:[%s1 + $0x58] sm:$0xf]
  %v90 = vld [vmem:[%s1 + $0x5c] sm:$0xf]
  %v91 = vld [vmem:[%s1 + $0x60] sm:$0xf]
  %v92 = vld [vmem:[%s1 + $0x64] sm:$0xf]
  %v93 = vld [vmem:[%s1 + $0x68] sm:$0xf]
  %v94 = vld [vmem:[%s1 + $0x6c] sm:$0xf]
  %v95 = vld [vmem:[%s1 + $0x70] sm:$0xf]
  %v96 = vld [vmem:[%s1 + $0x74] sm:$0xf]
  %v97 = vld [vmem:[%s1 + $0x78] sm:$0xf]
  %v98 = vld [vmem:[%s1 + $0x7c] sm:$0xf]
  %v115 = vunpack.c.l.b16 %v51
  %v116 = vunpack.c.h.b16 %v51
  %v117 = vunpack.c.l.b16 %v52
  %v118 = vunpack.c.h.b16 %v52
  %v119 = vunpack.c.l.b16 %v53
  %v120 = vunpack.c.h.b16 %v53
  %v121 = vunpack.c.l.b16 %v54
  %v122 = vunpack.c.h.b16 %v54
  %v123 = vunpack.c.l.b16 %v55
  %v124 = vunpack.c.h.b16 %v55
  %v125 = vunpack.c.l.b16 %v56
  %v126 = vunpack.c.h.b16 %v56
  %v127 = vunpack.c.l.b16 %v57
  %v128 = vunpack.c.h.b16 %v57
  %v129 = vunpack.c.l.b16 %v58
  %v130 = vunpack.c.h.b16 %v58
  %v131 = vunpack.c.l.b16 %v59
  %v132 = vunpack.c.h.b16 %v59
  %v133 = vunpack.c.l.b16 %v60
  %v134 = vunpack.c.h.b16 %v60
  %v135 = vunpack.c.l.b16 %v61
  %v136 = vunpack.c.h.b16 %v61
  %v137 = vunpack.c.l.b16 %v62
  %v138 = vunpack.c.h.b16 %v62
  %v139 = vunpack.c.l.b16 %v63
  %v140 = vunpack.c.h.b16 %v63
  %v141 = vunpack.c.l.b16 %v64
  %v142 = vunpack.c.h.b16 %v64
  %v143 = vunpack.c.l.b16 %v65
  %v144 = vunpack.c.h.b16 %v65
  %v145 = vunpack.c.l.b16 %v66
  %v146 = vunpack.c.h.b16 %v66
  %v147 = vpack.c.b16 %v117, %v115
  %v148 = vpack.c.b16 %v118, %v116
  %v149 = vpack.c.b16 %v121, %v119
  %v150 = vpack.c.b16 %v122, %v120
  %v151 = vpack.c.b16 %v125, %v123
  %v152 = vpack.c.b16 %v126, %v124
  %v153 = vpack.c.b16 %v129, %v127
  %v154 = vpack.c.b16 %v130, %v128
  %v155 = vpack.c.b16 %v133, %v131
  %v156 = vpack.c.b16 %v134, %v132
  %v157 = vpack.c.b16 %v137, %v135
  %v158 = vpack.c.b16 %v138, %v136
  %v159 = vpack.c.b16 %v141, %v139
  %v160 = vpack.c.b16 %v142, %v140
  %v161 = vpack.c.b16 %v145, %v143
  %v162 = vpack.c.b16 %v146, %v144
  %v211 = vunpack.c.l.b16 %v67
  %v212 = vunpack.c.l.b16 %v68
  %v213 = vunpack.c.l.b16 %v69
  %v214 = vunpack.c.l.b16 %v70
  %v215 = vunpack.c.l.b16 %v71
  %v216 = vunpack.c.l.b16 %v72
  %v217 = vunpack.c.l.b16 %v73
  %v218 = vunpack.c.l.b16 %v74
  %v219 = vunpack.c.l.b16 %v75
  %v220 = vunpack.c.l.b16 %v76
  %v221 = vunpack.c.l.b16 %v77
  %v222 = vunpack.c.l.b16 %v78
  %v223 = vunpack.c.l.b16 %v79
  %v224 = vunpack.c.l.b16 %v80
  %v225 = vunpack.c.l.b16 %v81
  %v226 = vunpack.c.l.b16 %v82
  %v227 = vunpack.c.l.b16 %v83
  %v228 = vunpack.c.l.b16 %v84
  %v229 = vunpack.c.l.b16 %v85
  %v230 = vunpack.c.l.b16 %v86
  %v231 = vunpack.c.l.b16 %v87
  %v232 = vunpack.c.l.b16 %v88
  %v233 = vunpack.c.l.b16 %v89
  %v234 = vunpack.c.l.b16 %v90
  %v235 = vunpack.c.l.b16 %v91
  %v236 = vunpack.c.l.b16 %v92
  %v237 = vunpack.c.l.b16 %v93
  %v238 = vunpack.c.l.b16 %v94
  %v239 = vunpack.c.l.b16 %v95
  %v240 = vunpack.c.l.b16 %v96
  %v241 = vunpack.c.l.b16 %v97
  %v242 = vunpack.c.l.b16 %v98
  %v243 = vpack.c.b16 %v212, %v211
  %v244 = vpack.c.b16 %v214, %v213
  %v245 = vpack.c.b16 %v216, %v215
  %v246 = vpack.c.b16 %v218, %v217
  %v247 = vpack.c.b16 %v220, %v219
  %v248 = vpack.c.b16 %v222, %v221
  %v249 = vpack.c.b16 %v224, %v223
  %v250 = vpack.c.b16 %v226, %v225
  %v251 = vpack.c.b16 %v228, %v227
  %v252 = vpack.c.b16 %v230, %v229
  %v253 = vpack.c.b16 %v232, %v231
  %v254 = vpack.c.b16 %v234, %v233
  %v255 = vpack.c.b16 %v236, %v235
  %v256 = vpack.c.b16 %v238, %v237
  %v257 = vpack.c.b16 %v240, %v239
  %v258 = vpack.c.b16 %v242, %v241
  %275 = vmatprep.subr.bf16.mxu0 0
  %276 = vmatpush1.bf16.msra.mxu0 %v243
  %277 = vmatprep.subr.bf16.mxu0 0
  %278 = vmatpush1.bf16.msra.mxu0 %v244
  %279 = vmatprep.subr.bf16.mxu0 0
  %280 = vmatpush1.bf16.msra.mxu0 %v245
  %281 = vmatprep.subr.bf16.mxu0 0
  %282 = vmatpush1.bf16.msra.mxu0 %v246
  %283 = vmatprep.subr.bf16.mxu0 0
  %284 = vmatpush1.bf16.msra.mxu0 %v247
  %285 = vmatprep.subr.bf16.mxu0 0
  %286 = vmatpush1.bf16.msra.mxu0 %v248
  %287 = vmatprep.subr.bf16.mxu0 0
  %288 = vmatpush1.bf16.msra.mxu0 %v249
  %289 = vmatprep.subr.bf16.mxu0 0
  %290 = vmatpush1.bf16.msra.mxu0 %v250
  %291 = vmatprep.subr.bf16.mxu0 0
  %292 = vmatpush1.bf16.msra.mxu0 %v251
  %293 = vmatprep.subr.bf16.mxu0 0
  %294 = vmatpush1.bf16.msra.mxu0 %v252
  %295 = vmatprep.subr.bf16.mxu0 0
  %296 = vmatpush1.bf16.msra.mxu0 %v253
  %297 = vmatprep.subr.bf16.mxu0 0
  %298 = vmatpush1.bf16.msra.mxu0 %v254
  %299 = vmatprep.subr.bf16.mxu0 0
  %300 = vmatpush1.bf16.msra.mxu0 %v255
  %301 = vmatprep.subr.bf16.mxu0 0
  %302 = vmatpush1.bf16.msra.mxu0 %v256
  %303 = vmatprep.subr.bf16.mxu0 0
  %304 = vmatpush1.bf16.msra.mxu0 %v257
  %305 = vmatprep.subr.bf16.mxu0 0
  %306 = vmatpush1.bf16.msra.mxu0 %v258
  %307 = vmatprep.mubr.bf16.mxu0 %v148
  %308 = vmatmul.mubr.bf16.gmra.mrb[0].mxu0 %v147
  %v309 = vpop.f32.mrb[0].mxu0
  %v310 = vadd.f32 0.0, %v309
  %v311 = vpop.f32.mrb[0].mxu0
  %v312 = vpop.f32.mrb[0].mxu0
  %v313 = vadd.f32 0.0, %v312
  %v314 = vpop.f32.mrb[0].mxu0
  %315 = vmatprep.mubr.bf16.mxu0 %v150
  %316 = vmatmul.mubr.bf16.gmra.mrb[0].mxu0 %v149
  %v317 = vpop.f32.mrb[0].mxu0
  %v318 = vadd.f32 0.0, %v317
  %v319 = vpop.f32.mrb[0].mxu0
  %v320 = vpop.f32.mrb[0].mxu0
  %v321 = vadd.f32 0.0, %v320
  %v322 = vpop.f32.mrb[0].mxu0
  %323 = vmatprep.mubr.bf16.mxu0 %v152
  %324 = vmatmul.mubr.bf16.gmra.mrb[0].mxu0 %v151
  %v325 = vpop.f32.mrb[0].mxu0
  %v326 = vadd.f32 0.0, %v325
  %v327 = vpop.f32.mrb[0].mxu0
  %v328 = vpop.f32.mrb[0].mxu0
  %v329 = vadd.f32 0.0, %v328
  %v330 = vpop.f32.mrb[0].mxu0
  %331 = vmatprep.mubr.bf16.mxu0 %v154
  %332 = vmatmul.mubr.bf16.gmra.mrb[0].mxu0 %v153
  %v333 = vpop.f32.mrb[0].mxu0
  %v334 = vadd.f32 0.0, %v333
  %v335 = vpop.f32.mrb[0].mxu0
  %v336 = vpop.f32.mrb[0].mxu0
  %v337 = vadd.f32 0.0, %v336
  %v338 = vpop.f32.mrb[0].mxu0
  %339 = vmatprep.mubr.bf16.mxu0 %v156
  %340 = vmatmul.mubr.bf16.gmra.mrb[0].mxu0 %v155
  %v341 = vpop.f32.mrb[0].mxu0
  %v342 = vadd.f32 0.0, %v341
  %v343 = vpop.f32.mrb[0].mxu0
  %v344 = vpop.f32.mrb[0].mxu0
  %v345 = vadd.f32 0.0, %v344
  %v346 = vpop.f32.mrb[0].mxu0
  %347 = vmatprep.mubr.bf16.mxu0 %v158
  %348 = vmatmul.mubr.bf16.gmra.mrb[0].mxu0 %v157
  %v349 = vpop.f32.mrb[0].mxu0
  %v350 = vadd.f32 0.0, %v349
  %v351 = vpop.f32.mrb[0].mxu0
  %v352 = vpop.f32.mrb[0].mxu0
  %v353 = vadd.f32 0.0, %v352
  %v354 = vpop.f32.mrb[0].mxu0
  %355 = vmatprep.mubr.bf16.mxu0 %v160
  %356 = vmatmul.mubr.bf16.gmra.mrb[0].mxu0 %v159
  %v357 = vpop.f32.mrb[0].mxu0
  %v358 = vadd.f32 0.0, %v357
  %v359 = vpop.f32.mrb[0].mxu0
  %v360 = vpop.f32.mrb[0].mxu0
  %v361 = vadd.f32 0.0, %v360
  %v362 = vpop.f32.mrb[0].mxu0
  %363 = vmatprep.mubr.bf16.mxu0 %v162
  %364 = vmatmul.mubr.bf16.gmra.mrb[0].mxu0 %v161
  %v365 = vpop.f32.mrb[0].mxu0
  %v366 = vadd.f32 0.0, %v365
  %v367 = vpop.f32.mrb[0].mxu0
  %v368 = vpop.f32.mrb[0].mxu0
  %v369 = vadd.f32 0.0, %v368
  %v370 = vpop.f32.mrb[0].mxu0
  %371 = vdwg.mxu0
  %v372 = vadd.f32 %v35, %v310
  %v373 = vadd.f32 %v36, %v313
  %v374 = vadd.f32 %v37, %v318
  %v375 = vadd.f32 %v38, %v321
  %v376 = vadd.f32 %v39, %v326
  %v377 = vadd.f32 %v40, %v329
  %v378 = vadd.f32 %v41, %v334
  %v379 = vadd.f32 %v42, %v337
  %v380 = vadd.f32 %v43, %v342
  %v381 = vadd.f32 %v44, %v345
  %v382 = vadd.f32 %v45, %v350
  %v383 = vadd.f32 %v46, %v353
  %v384 = vadd.f32 %v47, %v358
  %v385 = vadd.f32 %v48, %v361
  %v386 = vadd.f32 %v49, %v366
  %v387 = vadd.f32 %v50, %v369
  %388 = vst [vmem:[#allocation2] sm:$0xff] %v372
  %389 = vst [vmem:[#allocation2 + $0x8] sm:$0xff] %v373
  %390 = vst [vmem:[#allocation2 + $0x10] sm:$0xff] %v374
  %391 = vst [vmem:[#allocation2 + $0x18] sm:$0xff] %v375
  %392 = vst [vmem:[#allocation2 + $0x20] sm:$0xff] %v376
  %393 = vst [vmem:[#allocation2 + $0x28] sm:$0xff] %v377
  %394 = vst [vmem:[#allocation2 + $0x30] sm:$0xff] %v378
  %395 = vst [vmem:[#allocation2 + $0x38] sm:$0xff] %v379
  %396 = vst [vmem:[#allocation2 + $0x40] sm:$0xff] %v380
  %397 = vst [vmem:[#allocation2 + $0x48] sm:$0xff] %v381
  %398 = vst [vmem:[#allocation2 + $0x50] sm:$0xff] %v382
  %399 = vst [vmem:[#allocation2 + $0x58] sm:$0xff] %v383
  %400 = vst [vmem:[#allocation2 + $0x60] sm:$0xff] %v384
  %401 = vst [vmem:[#allocation2 + $0x68] sm:$0xff] %v385
  %402 = vst [vmem:[#allocation2 + $0x70] sm:$0xff] %v386
  %403 = vst [vmem:[#allocation2 + $0x78] sm:$0xff] %v387
  // Predicated region
  $region14: #{densenet3_forward.56} parent=0 // pred_check
    %p404 = pneg %p15
  $region15: #{densenet3_forward.56} parent=0 // pred_check_branch
    %406 = sbr.rel (%p404) target = $region17
  $region16: #{densenet3_forward.56} parent=0 // pred_region
    %v407 = vld [vmem:[#allocation2] sm:$0xff]
    %v408 = vld [vmem:[#allocation2 + $0x8] sm:$0xff]
    %v409 = vld [vmem:[#allocation2 + $0x10] sm:$0xff]
    %v410 = vld [vmem:[#allocation2 + $0x18] sm:$0xff]
    %v411 = vld [vmem:[#allocation2 + $0x20] sm:$0xff]
    %v412 = vld [vmem:[#allocation2 + $0x28] sm:$0xff]
    %v413 = vld [vmem:[#allocation2 + $0x30] sm:$0xff]
    %v414 = vld [vmem:[#allocation2 + $0x38] sm:$0xff]
    %v415 = vld [vmem:[#allocation2 + $0x40] sm:$0xff]
    %v416 = vld [vmem:[#allocation2 + $0x48] sm:$0xff]
    %v417 = vld [vmem:[#allocation2 + $0x50] sm:$0xff]
    %v418 = vld [vmem:[#allocation2 + $0x58] sm:$0xff]
    %v419 = vld [vmem:[#allocation2 + $0x60] sm:$0xff]
    %v420 = vld [vmem:[#allocation2 + $0x68] sm:$0xff]
    %v421 = vld [vmem:[#allocation2 + $0x70] sm:$0xff]
    %v422 = vld [vmem:[#allocation2 + $0x78] sm:$0xff]
    %v423 = vpack.c.bf16 %v408, %v407
    %v424 = vpack.c.bf16 %v410, %v409
    %v425 = vpack.c.bf16 %v412, %v411
    %v426 = vpack.c.bf16 %v414, %v413
    %v427 = vpack.c.bf16 %v416, %v415
    %v428 = vpack.c.bf16 %v418, %v417
    %v429 = vpack.c.bf16 %v420, %v419
    %v430 = vpack.c.bf16 %v422, %v421
    %v439 = vunpack.c.l.b16 %v423
    %v440 = vunpack.c.h.b16 %v423
    %v441 = vunpack.c.l.b16 %v424
    %v442 = vunpack.c.h.b16 %v424
    %v443 = vunpack.c.l.b16 %v425
    %v444 = vunpack.c.h.b16 %v425
    %v445 = vunpack.c.l.b16 %v426
    %v446 = vunpack.c.h.b16 %v426
    %v447 = vunpack.c.l.b16 %v427
    %v448 = vunpack.c.h.b16 %v427
    %v449 = vunpack.c.l.b16 %v428
    %v450 = vunpack.c.h.b16 %v428
    %v451 = vunpack.c.l.b16 %v429
    %v452 = vunpack.c.h.b16 %v429
    %v453 = vunpack.c.l.b16 %v430
    %v454 = vunpack.c.h.b16 %v430
    %v455 = vpack.c.b16 %v439, %v439
    %v456 = vpack.c.b16 %v440, %v440
    %v457 = vpack.c.b16 %v441, %v441
    %v458 = vpack.c.b16 %v442, %v442
    %v459 = vpack.c.b16 %v443, %v443
    %v460 = vpack.c.b16 %v444, %v444
    %v461 = vpack.c.b16 %v445, %v445
    %v462 = vpack.c.b16 %v446, %v446
    %v463 = vpack.c.b16 %v447, %v447
    %v464 = vpack.c.b16 %v448, %v448
    %v465 = vpack.c.b16 %v449, %v449
    %v466 = vpack.c.b16 %v450, %v450
    %v467 = vpack.c.b16 %v451, %v451
    %v468 = vpack.c.b16 %v452, %v452
    %v469 = vpack.c.b16 %v453, %v453
    %v470 = vpack.c.b16 %v454, %v454
    %487 = vst [vmem:[%s2] sm:$0xf] %v455
    %488 = vst [vmem:[%s2 + $0x4] sm:$0xf] %v456
    %489 = vst [vmem:[%s2 + $0x8] sm:$0xf] %v457
    %490 = vst [vmem:[%s2 + $0xc] sm:$0xf] %v458
    %491 = vst [vmem:[%s2 + $0x10] sm:$0xf] %v459
    %492 = vst [vmem:[%s2 + $0x14] sm:$0xf] %v460
    %493 = vst [vmem:[%s2 + $0x18] sm:$0xf] %v461
    %494 = vst [vmem:[%s2 + $0x1c] sm:$0xf] %v462
    %495 = vst [vmem:[%s2 + $0x20] sm:$0xf] %v463
    %496 = vst [vmem:[%s2 + $0x24] sm:$0xf] %v464
    %497 = vst [vmem:[%s2 + $0x28] sm:$0xf] %v465
    %498 = vst [vmem:[%s2 + $0x2c] sm:$0xf] %v466
    %499 = vst [vmem:[%s2 + $0x30] sm:$0xf] %v467
    %500 = vst [vmem:[%s2 + $0x34] sm:$0xf] %v468
    %501 = vst [vmem:[%s2 + $0x38] sm:$0xf] %v469
    %502 = vst [vmem:[%s2 + $0x3c] sm:$0xf] %v470
    %v503 = vadd.f32 %v407, %v408
    %v504 = vadd.f32 %v503, %v409
    %v505 = vadd.f32 %v504, %v410
    %v506 = vadd.f32 %v505, %v411
    %v507 = vadd.f32 %v506, %v412
    %v508 = vadd.f32 %v507, %v413
    %v509 = vadd.f32 %v508, %v414
    %v510 = vadd.f32 %v509, %v415
    %v511 = vadd.f32 %v510, %v416
    %v512 = vadd.f32 %v511, %v417
    %v513 = vadd.f32 %v512, %v418
    %v514 = vadd.f32 %v513, %v419
    %v515 = vadd.f32 %v514, %v420
    %v516 = vadd.f32 %v515, %v421
    %v517 = vadd.f32 %v516, %v422
    %v518 = vrot.slane %v517, 4
    %v519 = vadd.f32 %v517, %v518
    %v520 = vrot.slane %v519, 2
    %v521 = vadd.f32 %v519, %v520
    %v522 = vrot.slane %v521, 1
    %v523 = vadd.f32 %v521, %v522
    %524 = vst [vmem:[%s3] sm:$0xff] %v523
    %v525 = vmul.f32 %v407, %v407
    %v526 = vmul.f32 %v408, %v408
    %v527 = vmul.f32 %v409, %v409
    %v528 = vmul.f32 %v410, %v410
    %v529 = vmul.f32 %v411, %v411
    %v530 = vmul.f32 %v412, %v412
    %v531 = vmul.f32 %v413, %v413
    %v532 = vmul.f32 %v414, %v414
    %v533 = vmul.f32 %v415, %v415
    %v534 = vmul.f32 %v416, %v416
    %v535 = vmul.f32 %v417, %v417
    %v536 = vmul.f32 %v418, %v418
    %v537 = vmul.f32 %v419, %v419
    %v538 = vmul.f32 %v420, %v420
    %v539 = vmul.f32 %v421, %v421
    %v540 = vmul.f32 %v422, %v422
    %v541 = vadd.f32 %v525, %v526
    %v542 = vadd.f32 %v541, %v527
    %v543 = vadd.f32 %v542, %v528
    %v544 = vadd.f32 %v543, %v529
    %v545 = vadd.f32 %v544, %v530
    %v546 = vadd.f32 %v545, %v531
    %v547 = vadd.f32 %v546, %v532
    %v548 = vadd.f32 %v547, %v533
    %v549 = vadd.f32 %v548, %v534
    %v550 = vadd.f32 %v549, %v535
    %v551 = vadd.f32 %v550, %v536
    %v552 = vadd.f32 %v551, %v537
    %v553 = vadd.f32 %v552, %v538
    %v554 = vadd.f32 %v553, %v539
    %v555 = vadd.f32 %v554, %v540
    %v556 = vrot.slane %v555, 4
    %v557 = vadd.f32 %v555, %v556
    %v558 = vrot.slane %v557, 2
    %v559 = vadd.f32 %v557, %v558
    %v560 = vrot.slane %v559, 1
    %v561 = vadd.f32 %v559, %v560
    %562 = vst [vmem:[%s4] sm:$0xff] %v561
  $region17: #{densenet3_forward.56} parent=0 // pred_fallthru
    _
  // Predicated region
  $region18: #{densenet3_forward.56} parent=0 // pred_check
    _
  $region19: #{densenet3_forward.56} parent=0 // pred_check_branch
    %564 = sbr.rel (0) target = $region21
  $region20: #{densenet3_forward.56} parent=0 // pred_region
    _
  $region21: #{densenet3_forward.56} parent=0 // pred_fallthru
    _
  // Predicated region
  $region22: #{densenet3_forward.56} parent=0 // pred_check
    _
  $region23: #{densenet3_forward.56} parent=0 // pred_check_branch
    %566 = sbr.rel (0) target = $region25
  $region24: #{densenet3_forward.56} parent=0 // pred_region
    _
  $region25: #{densenet3_forward.56} parent=0 // pred_fallthru
    _
  // Predicated region
  $region26: #{densenet3_forward.56} parent=0 // pred_check
    _
  $region27: #{densenet3_forward.56} parent=0 // pred_check_branch
    %568 = sbr.rel (0) target = $region29
  $region28: #{densenet3_forward.56} parent=0 // pred_region
    _
  $region29: #{densenet3_forward.56} parent=0 // pred_fallthru
    _
  // Predicated region
  $region30: #{densenet3_forward.56} parent=0 // pred_check
    _
  $region31: #{densenet3_forward.56} parent=0 // pred_check_branch
    %570 = sbr.rel (0) target = $region33
  $region32: #{densenet3_forward.56} parent=0 // pred_region
    _
  $region33: #{densenet3_forward.56} parent=0 // pred_fallthru
    _
  // Predicated region
  $region34: #{densenet3_forward.56} parent=0 // pred_check
    _
  $region35: #{densenet3_forward.56} parent=0 // pred_check_branch
    %572 = sbr.rel (0) target = $region37
  $region36: #{densenet3_forward.56} parent=0 // pred_region
    _
  $region37: #{densenet3_forward.56} parent=0 // pred_fallthru
    _
  // Predicated region
  $region38: #{densenet3_forward.56} parent=0 // pred_check
    _
  $region39: #{densenet3_forward.56} parent=0 // pred_check_branch
    %574 = sbr.rel (0) target = $region41
  $region40: #{densenet3_forward.56} parent=0 // pred_region
    _
  $region41: #{densenet3_forward.56} parent=0 // pred_fallthru
    _

// kernel: densenet3_forward.90
$region0: #{densenet3_forward.90}
  #allocation0 [shape = 'u32[]', space=smem, size = 0x4, offset = 0x4, fixed_abs, tag = 'smem constant byte address 0x4 - core index']
  #allocation1 [shape = 'u32[144,128]{1,0:T(1,128)}', space=vmem, size = 0x12000, scoped, tag = 'internal scratch']
  %s0 = inlined_call_operand.vmem [shape: bf16[128,128], index: 0, kind: input, shape index: {}]
  %s1 = inlined_call_operand.vmem [shape: f32[8,128], index: 1, kind: output, shape index: {0}]
  %s2 = inlined_call_operand.vmem [shape: f32[8,128], index: 2, kind: output, shape index: {1}]
  %3 = xla_tuple %s1, %s2
  %s4 = sld [smem:[#allocation0]]
  $region22: #{densenet3_forward.90} parent=0
    _
  %s6 = ssub.s32 1, %s4
  %s7 = scalar_select 0, %s6, %s4
  // Predicated region
  $region2: #{densenet3_forward.90} parent=0 // pred_check
    _
  $region3: #{densenet3_forward.90} parent=0 // pred_check_branch
    %9 = sbr.rel (0) target = $region5
  $region4: #{densenet3_forward.90} parent=0 // pred_region
    _
  $region5: #{densenet3_forward.90} parent=0 // pred_fallthru
    _
  %v10 = vld [vmem:[%s0] sm:$0xf]
  %v11 = vld [vmem:[%s0 + $0x4] sm:$0xf]
  %v12 = vld [vmem:[%s0 + $0x8] sm:$0xf]
  %v13 = vld [vmem:[%s0 + $0xc] sm:$0xf]
  %v14 = vld [vmem:[%s0 + $0x10] sm:$0xf]
  %v15 = vld [vmem:[%s0 + $0x14] sm:$0xf]
  %v16 = vld [vmem:[%s0 + $0x18] sm:$0xf]
  %v17 = vld [vmem:[%s0 + $0x1c] sm:$0xf]
  %v18 = vld [vmem:[%s0 + $0x20] sm:$0xf]
  %v19 = vld [vmem:[%s0 + $0x24] sm:$0xf]
  %v20 = vld [vmem:[%s0 + $0x28] sm:$0xf]
  %v21 = vld [vmem:[%s0 + $0x2c] sm:$0xf]
  %v22 = vld [vmem:[%s0 + $0x30] sm:$0xf]
  %v23 = vld [vmem:[%s0 + $0x34] sm:$0xf]
  %v24 = vld [vmem:[%s0 + $0x38] sm:$0xf]
  %v25 = vld [vmem:[%s0 + $0x3c] sm:$0xf]
  %v26 = vunpack.c.l.bf16 %v10
  %v27 = vunpack.c.l.bf16 %v11
  %v28 = vunpack.c.l.bf16 %v12
  %v29 = vunpack.c.l.bf16 %v13
  %v30 = vunpack.c.l.bf16 %v14
  %v31 = vunpack.c.l.bf16 %v15
  %v32 = vunpack.c.l.bf16 %v16
  %v33 = vunpack.c.l.bf16 %v17
  %v34 = vunpack.c.l.bf16 %v18
  %v35 = vunpack.c.l.bf16 %v19
  %v36 = vunpack.c.l.bf16 %v20
  %v37 = vunpack.c.l.bf16 %v21
  %v38 = vunpack.c.l.bf16 %v22
  %v39 = vunpack.c.l.bf16 %v23
  %v40 = vunpack.c.l.bf16 %v24
  %v41 = vunpack.c.l.bf16 %v25
  %v42 = vadd.f32 %v26, %v27
  %v43 = vadd.f32 %v42, %v28
  %v44 = vadd.f32 %v43, %v29
  %v45 = vadd.f32 %v44, %v30
  %v46 = vadd.f32 %v45, %v31
  %v47 = vadd.f32 %v46, %v32
  %v48 = vadd.f32 %v47, %v33
  %v49 = vadd.f32 %v48, %v34
  %v50 = vadd.f32 %v49, %v35
  %v51 = vadd.f32 %v50, %v36
  %v52 = vadd.f32 %v51, %v37
  %v53 = vadd.f32 %v52, %v38
  %v54 = vadd.f32 %v53, %v39
  %v55 = vadd.f32 %v54, %v40
  %v56 = vadd.f32 %v55, %v41
  %v57 = vrot.slane %v56, 4
  %v58 = vadd.f32 %v56, %v57
  %v59 = vrot.slane %v58, 2
  %v60 = vadd.f32 %v58, %v59
  %v61 = vrot.slane %v60, 1
  %v62 = vadd.f32 %v60, %v61
  %63 = vst [vmem:[%s1] sm:$0xff] %v62
  %v64 = vmul.f32 %v26, %v26
  %v65 = vmul.f32 %v27, %v27
  %v66 = vmul.f32 %v28, %v28
  %v67 = vmul.f32 %v29, %v29
  %v68 = vmul.f32 %v30, %v30
  %v69 = vmul.f32 %v31, %v31
  %v70 = vmul.f32 %v32, %v32
  %v71 = vmul.f32 %v33, %v33
  %v72 = vmul.f32 %v34, %v34
  %v73 = vmul.f32 %v35, %v35
  %v74 = vmul.f32 %v36, %v36
  %v75 = vmul.f32 %v37, %v37
  %v76 = vmul.f32 %v38, %v38
  %v77 = vmul.f32 %v39, %v39
  %v78 = vmul.f32 %v40, %v40
  %v79 = vmul.f32 %v41, %v41
  %v80 = vadd.f32 %v64, %v65
  %v81 = vadd.f32 %v80, %v66
  %v82 = vadd.f32 %v81, %v67
  %v83 = vadd.f32 %v82, %v68
  %v84 = vadd.f32 %v83, %v69
  %v85 = vadd.f32 %v84, %v70
  %v86 = vadd.f32 %v85, %v71
  %v87 = vadd.f32 %v86, %v72
  %v88 = vadd.f32 %v87, %v73
  %v89 = vadd.f32 %v88, %v74
  %v90 = vadd.f32 %v89, %v75
  %v91 = vadd.f32 %v90, %v76
  %v92 = vadd.f32 %v91, %v77
  %v93 = vadd.f32 %v92, %v78
  %v94 = vadd.f32 %v93, %v79
  %v95 = vrot.slane %v94, 4
  %v96 = vadd.f32 %v94, %v95
  %v97 = vrot.slane %v96, 2
  %v98 = vadd.f32 %v96, %v97
  %v99 = vrot.slane %v98, 1
  %v100 = vadd.f32 %v98, %v99
  %101 = vst [vmem:[%s2] sm:$0xff] %v100
  // Predicated region
  $region6: #{densenet3_forward.90} parent=0 // pred_check
    _
  $region7: #{densenet3_forward.90} parent=0 // pred_check_branch
    %103 = sbr.rel (0) target = $region9
  $region8: #{densenet3_forward.90} parent=0 // pred_region
    _
  $region9: #{densenet3_forward.90} parent=0 // pred_fallthru
    _
  // Predicated region
  $region10: #{densenet3_forward.90} parent=0 // pred_check
    _
  $region11: #{densenet3_forward.90} parent=0 // pred_check_branch
    %105 = sbr.rel (0) target = $region13
  $region12: #{densenet3_forward.90} parent=0 // pred_region
    _
  $region13: #{densenet3_forward.90} parent=0 // pred_fallthru
    _
  // Predicated region
  $region14: #{densenet3_forward.90} parent=0 // pred_check
    _
  $region15: #{densenet3_forward.90} parent=0 // pred_check_branch
    %107 = sbr.rel (0) target = $region17
  $region16: #{densenet3_forward.90} parent=0 // pred_region
    _
  $region17: #{densenet3_forward.90} parent=0 // pred_fallthru
    _
  // Predicated region
  $region18: #{densenet3_forward.90} parent=0 // pred_check
    _
  $region19: #{densenet3_forward.90} parent=0 // pred_check_branch
    %109 = sbr.rel (0) target = $region21
  $region20: #{densenet3_forward.90} parent=0 // pred_region
    _
  $region21: #{densenet3_forward.90} parent=0 // pred_fallthru
    _

</llo_original>
